<compile_context>
chip_gen: v5e
topology: v5e:2x2
jax: 0.10.0
libtpu: 0.0.40
codegen_flags: <defaults>
</compile_context>

<pallas_src>
import functools

import jax
import jax.numpy as jnp
from jax import lax
from jax.experimental import pallas as pl
from jax.experimental.pallas import tpu as pltpu


# ------------------------------ Fused kernel -------------------------------- #

def _fused_attention_kernel(x_ref, wqkv_ref, wproj_ref, bproj_ref, bias_ref,
                            o_ref, scores_ref, attn_ref, *,
                            batch, seq_len, num_heads):
    """Whole forward for the full batch in one grid step; all data in VMEM.

    x_ref     : (B*N, C)     tokens (compute dtype; bf16 in production)
    wqkv_ref  : (C, 3C)      qkv weight (in, out); Q columns pre-scaled by Dh^-0.5
    wproj_ref : (C, C)       output-projection weight (in, out)
    bproj_ref : (1, C)       output-projection bias (f32)
    bias_ref  : (B, 1, N)    additive key-mask bias (f32; 0 = attend, -1e30 = masked)
    o_ref     : (B*N, C)     output tokens
    scores_ref: (B, H*N, N)  f32 scratch — all heads' scores, sublane-stacked
    attn_ref  : (B*N, C)     compute-dtype scratch — attention-output slab
    """
    B, N, H = batch, seq_len, num_heads
    C = x_ref.shape[-1]
    Dh = C // H
    cdt = x_ref.dtype  # compute dtype for MXU operands (bf16 or f32)

    # --- QKV projection: one MXU matmul for the whole batch, f32 accumulation.
    #     (qkv_bias=False in the module, so no bias add here.)
    qkv = jnp.dot(x_ref[...], wqkv_ref[...],
                  preferred_element_type=jnp.float32)                # (B*N, 3C) f32

    # --- q @ k^T per (batch, head), contracted on the last dims (no transpose),
    #     written into one sublane-stacked (B, H*N, N) score slab.
    #     Scale is already folded into the Q columns of w_qkv (wrapper-side).
    for b in range(B):
        rows = slice(b * N, (b + 1) * N)
        for h in range(H):
            q_h = qkv[rows, h * Dh:(h + 1) * Dh].astype(cdt)          # (N, Dh)
            k_h = qkv[rows, C + h * Dh:C + (h + 1) * Dh].astype(cdt)  # (N, Dh)
            s = lax.dot_general(q_h, k_h, (((1,), (1,)), ((), ())),
                                preferred_element_type=jnp.float32)   # (N, N)
            scores_ref[b, h * N:(h + 1) * N, :] = s

    # --- Masked softmax over keys, done ONCE for all (b, h, q) rows, all in f32.
    #     Single broadcast of the (B, 1, N) bias (not one per head).
    s_all = scores_ref[...] + bias_ref[...]                           # (B, H*N, N)
    s_all = s_all - jnp.max(s_all, axis=-1, keepdims=True)
    p_all = jnp.exp(s_all)
    # Exact divide (the approx EUP reciprocal caused the previous mismatch).
    p_all = p_all / jnp.sum(p_all, axis=-1, keepdims=True)

    # --- attn @ v per (batch, head): write straight into the (B*N, C) slab
    #     (no list + concatenate, no lane re-assembly).
    for b in range(B):
        rows = slice(b * N, (b + 1) * N)
        for h in range(H):
            p_h = p_all[b, h * N:(h + 1) * N, :].astype(cdt)                      # (N, N)
            v_h = qkv[rows, 2 * C + h * Dh:2 * C + (h + 1) * Dh].astype(cdt)      # (N, Dh)
            o_h = jnp.dot(p_h, v_h, preferred_element_type=jnp.float32)           # (N, Dh)
            attn_ref[rows, h * Dh:(h + 1) * Dh] = o_h.astype(attn_ref.dtype)

    # --- Output projection (with bias), f32 accumulation.
    y = jnp.dot(attn_ref[...], wproj_ref[...],
                preferred_element_type=jnp.float32) + bproj_ref[...]
    o_ref[...] = y.astype(o_ref.dtype)


# ------------------------------ Module wrapper ------------------------------ #

def attention_forward(x, params, num_heads, mask=None, *,
                      compute_dtype=jnp.bfloat16):
    """Pallas equivalent of Attention.forward (eval mode, fused_attn semantics).

    x: (B, N, C) float32; mask: optional bool (B, N) over keys (True = attend).
    Weights are stored as (in_features, out_features) (torch weight transposed).
    compute_dtype: dtype of the MXU operands (bf16 for production; f32 for
    exact validation). Accumulation and softmax are always f32.
    """
    B, N, C = x.shape
    H = num_heads
    assert C % H == 0
    Dh = C // H
    scale = Dh ** (-0.5)

    # Key mask -> additive f32 bias (0 = attend, -1e30 = masked). Fully-masked
    # rows degrade to a uniform distribution (matches the f32 reference below).
    if mask is None:
        bias = jnp.zeros((B, 1, N), jnp.float32)
    else:
        bias = jnp.where(mask.reshape(B, 1, N), 0.0, -1e30).astype(jnp.float32)

    # One-time param prep: fold the attention scale into the Q third of w_qkv
    # and cast the MXU operands to the compute dtype (halves weight DMA/VMEM
    # in bf16 mode). Bias vectors stay f32.
    w_qkv = params["w_qkv"]
    col_scale = jnp.concatenate([jnp.full((C,), scale, w_qkv.dtype),
                                 jnp.ones((2 * C,), w_qkv.dtype)])
    w_qkv = (w_qkv * col_scale[None, :]).astype(compute_dtype)
    w_proj = params["w_proj"].astype(compute_dtype)
    b_proj = params["b_proj"].reshape(1, C).astype(jnp.float32)

    # Lane-dense 2-D I/O slab (free reshape: (B, N, C) is contiguous).
    x2 = x.reshape(B * N, C).astype(compute_dtype)

    kernel = functools.partial(_fused_attention_kernel,
                               batch=B, seq_len=N, num_heads=H)

    # Single grid step: one TensorCore on v5e/v6e -> grid=(B,) would only add
    # ~0.35 us/step of overhead at these sizes. (For large B on v7x, switch to
    # grid=(B,) with dimension_semantics=("parallel",) to use both cores.)
    # TODO(synk): output could be emitted as bf16 to halve HBM writeback if the
    #             caller accepts bf16 activations.
    y = pl.pallas_call(
        kernel,
        out_shape=jax.ShapeDtypeStruct((B * N, C), x.dtype),
        grid=(1,),
        in_specs=[
            pl.BlockSpec((B * N, C), lambda i: (0, 0)),       # x slab
            pl.BlockSpec((C, 3 * C), lambda i: (0, 0)),       # w_qkv (Q pre-scaled)
            pl.BlockSpec((C, C), lambda i: (0, 0)),           # w_proj
            pl.BlockSpec((1, C), lambda i: (0, 0)),           # b_proj
            pl.BlockSpec((B, 1, N), lambda i: (0, 0, 0)),     # mask bias
        ],
        out_specs=pl.BlockSpec((B * N, C), lambda i: (0, 0)),
        scratch_shapes=[
            pltpu.VMEM((B, H * N, N), jnp.float32),   # sublane-stacked scores
            pltpu.VMEM((B * N, C), compute_dtype),    # attention-output slab
        ],
        compiler_params=pltpu.CompilerParams(
            dimension_semantics=("arbitrary",)),
    )(x2, w_qkv, w_proj, b_proj, bias)

    return y.reshape(B, N, C)


# --------------------------------- Reference -------------------------------- #

def attention_reference(x, params, num_heads, mask=None):
    """Pure-JAX f32 reference (HIGHEST matmul precision)."""
    B, N, C = x.shape
    H = num_heads
    Dh = C // H
    scale = Dh ** (-0.5)
    hi = lax.Precision.HIGHEST
    qkv = jnp.dot(x.reshape(B * N, C), params["w_qkv"], precision=hi)
    qkv = qkv.reshape(B, N, 3, H, Dh).transpose(2, 0, 3, 1, 4)
    q, k, v = qkv[0], qkv[1], qkv[2]
    s = jnp.einsum("bhqd,bhkd->bhqk", q, k, precision=hi) * scale
    if mask is not None:
        s = jnp.where(mask.reshape(B, 1, 1, N), s, -1e30)
    p = jax.nn.softmax(s, axis=-1)
    o = jnp.einsum("bhqk,bhkd->bhqd", p, v, precision=hi)
    o = o.transpose(0, 2, 1, 3).reshape(B * N, C)
    y = jnp.dot(o, params["w_proj"], precision=hi) + params["b_proj"]
    return y.reshape(B, N, C)


# ----------------------------------- Main ----------------------------------- #

if __name__ == "__main__":
    B, N, C, H = 2, 8, 64, 8  # dim=64, num_heads=8 -> head_dim=8

    key = jax.random.PRNGKey(0)
    kx, kqkv, kp, kb = jax.random.split(key, 4)

    x = jax.random.normal(kx, (B, N, C), dtype=jnp.float32)
    params = {
        # stored as (in, out) == torch weight transposed
        "w_qkv": jax.random.normal(kqkv, (C, 3 * C), dtype=jnp.float32) * (C ** -0.5),
        "w_proj": jax.random.normal(kp, (C, C), dtype=jnp.float32) * (C ** -0.5),
        "b_proj": jax.random.normal(kb, (C,), dtype=jnp.float32) * 0.01,
    }
    # boolean key mask: first few positions valid per batch element
    lengths = jnp.array([8, 5], dtype=jnp.int32)
    mask = jnp.arange(N)[None, :] < lengths[:, None]  # (B, N) bool

    y_ref = attention_reference(x, params, num_heads=H, mask=mask)

    # 1) f32 compute path: verifies the kernel math against the reference
    #    (the approx-reciprocal error from the previous version is gone).
    fwd_f32 = jax.jit(functools.partial(attention_forward, num_heads=H,
                                        compute_dtype=jnp.float32))
    y_f32 = jax.block_until_ready(fwd_f32(x, params, mask=mask))
    assert y_f32.shape == (B, N, C)
    err32 = float(jnp.max(jnp.abs(y_f32 - y_ref)))
    assert jnp.allclose(y_f32, y_ref, atol=2e-3, rtol=2e-3), (
        f"f32 path mismatch vs. reference (max abs err {err32})")

    # 2) bf16 MXU-operand path (production default): f32 accumulation and f32
    #    softmax, so only bf16 input/weight rounding (~1e-2) separates it from
    #    the f32 reference.
    fwd_bf16 = jax.jit(functools.partial(attention_forward, num_heads=H,
                                         compute_dtype=jnp.bfloat16))
    y_bf16 = jax.block_until_ready(fwd_bf16(x, params, mask=mask))
    assert y_bf16.shape == (B, N, C)
    errbf = float(jnp.max(jnp.abs(y_bf16 - y_ref)))
    assert jnp.allclose(y_bf16, y_ref, atol=1e-1, rtol=1e-1), (
        f"bf16 path mismatch vs. reference (max abs err {errbf})")

    print("KERNEL_OK")
</pallas_src>

<mosaic_0001>
module attributes {stable_mosaic.version = 11 : i64} {
  func.func @_fused_attention_kernel(%arg0: i32, %arg1: memref<16x64xf32, #tpu.memory_space<vmem>>, %arg2: memref<64x192xf32, #tpu.memory_space<vmem>>, %arg3: memref<64x64xf32, #tpu.memory_space<vmem>>, %arg4: memref<1x64xf32, #tpu.memory_space<vmem>>, %arg5: memref<2x1x8xf32, #tpu.memory_space<vmem>>, %arg6: memref<16x64xf32, #tpu.memory_space<vmem>>, %arg7: memref<2x64x8xf32, #tpu.memory_space<vmem>>, %arg8: memref<16x64xf32, #tpu.memory_space<vmem>>) attributes {dimension_semantics = [#tpu.dimension_semantics<arbitrary>], iteration_bounds = array<i64: 1>, scalar_prefetch = 0 : i64, scratch_operands = 2 : i64, tpu.core_type = #tpu.core_type<tc>, window_params = [{pipeline_mode = #tpu.pipeline_mode<synchronous>, transform_indices = @transform_0, window_bounds = array<i64: 16, 64>}, {pipeline_mode = #tpu.pipeline_mode<synchronous>, transform_indices = @transform_1, window_bounds = array<i64: 64, 192>}, {pipeline_mode = #tpu.pipeline_mode<synchronous>, transform_indices = @transform_2, window_bounds = array<i64: 64, 64>}, {pipeline_mode = #tpu.pipeline_mode<synchronous>, transform_indices = @transform_3, window_bounds = array<i64: 1, 64>}, {pipeline_mode = #tpu.pipeline_mode<synchronous>, transform_indices = @transform_4, window_bounds = array<i64: 2, 1, 8>}, {pipeline_mode = #tpu.pipeline_mode<synchronous>, transform_indices = @transform_5, window_bounds = array<i64: 16, 64>}]} {
    %c0 = arith.constant 0 : index
    %c0_0 = arith.constant 0 : index
    %0 = vector.load %arg1[%c0, %c0_0] : memref<16x64xf32, #tpu.memory_space<vmem>>, vector<16x64xf32>
    %c0_1 = arith.constant 0 : index
    %c0_2 = arith.constant 0 : index
    %1 = vector.load %arg2[%c0_1, %c0_2] : memref<64x192xf32, #tpu.memory_space<vmem>>, vector<64x192xf32>
    %cst = arith.constant dense<0.000000e+00> : vector<16x192xf32>
    %2 = tpu.matmul %0, %1, %cst {dimension_numbers = #tpu.dot_dimension_numbers<[1], [0], [0], [1], [0, 0, 1, 1], [], []>} : vector<16x64xf32>, vector<64x192xf32>, vector<16x192xf32> -> vector<16x192xf32>
    %3 = vector.extract_strided_slice %2 {offsets = [0, 0], sizes = [8, 8], strides = [1, 1]} : vector<16x192xf32> to vector<8x8xf32>
    %4 = vector.extract_strided_slice %2 {offsets = [0, 64], sizes = [8, 8], strides = [1, 1]} : vector<16x192xf32> to vector<8x8xf32>
    %cst_3 = arith.constant dense<0.000000e+00> : vector<8x8xf32>
    %5 = tpu.matmul %3, %4, %cst_3 {dimension_numbers = #tpu.dot_dimension_numbers<[1], [1], [0], [0], [0, 0, 1, 0], [], []>} : vector<8x8xf32>, vector<8x8xf32>, vector<8x8xf32> -> vector<8x8xf32>
    %c0_4 = arith.constant 0 : index
    %c0_5 = arith.constant 0 : index
    %c0_6 = arith.constant 0 : index
    %6 = vector.load %arg7[%c0_4, %c0_5, %c0_6] : memref<2x64x8xf32, #tpu.memory_space<vmem>>, vector<1x8x8xf32>
    %7 = vector.shape_cast %6 : vector<1x8x8xf32> to vector<8x8xf32>
    %8 = vector.shape_cast %5 : vector<8x8xf32> to vector<1x8x8xf32>
    tpu.vector_store %arg7[%c0_4, %c0_5, %c0_6], %8 {strides = array<i32>} : memref<2x64x8xf32, #tpu.memory_space<vmem>>, vector<1x8x8xf32>,
    %9 = vector.extract_strided_slice %2 {offsets = [0, 8], sizes = [8, 8], strides = [1, 1]} : vector<16x192xf32> to vector<8x8xf32>
    %10 = vector.extract_strided_slice %2 {offsets = [0, 72], sizes = [8, 8], strides = [1, 1]} : vector<16x192xf32> to vector<8x8xf32>
    %cst_7 = arith.constant dense<0.000000e+00> : vector<8x8xf32>
    %11 = tpu.matmul %9, %10, %cst_7 {dimension_numbers = #tpu.dot_dimension_numbers<[1], [1], [0], [0], [0, 0, 1, 0], [], []>} : vector<8x8xf32>, vector<8x8xf32>, vector<8x8xf32> -> vector<8x8xf32>
    %c0_8 = arith.constant 0 : index
    %c8 = arith.constant 8 : index
    %c0_9 = arith.constant 0 : index
    %12 = vector.load %arg7[%c0_8, %c8, %c0_9] : memref<2x64x8xf32, #tpu.memory_space<vmem>>, vector<1x8x8xf32>
    %13 = vector.shape_cast %12 : vector<1x8x8xf32> to vector<8x8xf32>
    %14 = vector.shape_cast %11 : vector<8x8xf32> to vector<1x8x8xf32>
    tpu.vector_store %arg7[%c0_8, %c8, %c0_9], %14 {strides = array<i32>} : memref<2x64x8xf32, #tpu.memory_space<vmem>>, vector<1x8x8xf32>,
    %15 = vector.extract_strided_slice %2 {offsets = [0, 16], sizes = [8, 8], strides = [1, 1]} : vector<16x192xf32> to vector<8x8xf32>
    %16 = vector.extract_strided_slice %2 {offsets = [0, 80], sizes = [8, 8], strides = [1, 1]} : vector<16x192xf32> to vector<8x8xf32>
    %cst_10 = arith.constant dense<0.000000e+00> : vector<8x8xf32>
    %17 = tpu.matmul %15, %16, %cst_10 {dimension_numbers = #tpu.dot_dimension_numbers<[1], [1], [0], [0], [0, 0, 1, 0], [], []>} : vector<8x8xf32>, vector<8x8xf32>, vector<8x8xf32> -> vector<8x8xf32>
    %c0_11 = arith.constant 0 : index
    %c16 = arith.constant 16 : index
    %c0_12 = arith.constant 0 : index
    %18 = vector.load %arg7[%c0_11, %c16, %c0_12] : memref<2x64x8xf32, #tpu.memory_space<vmem>>, vector<1x8x8xf32>
    %19 = vector.shape_cast %18 : vector<1x8x8xf32> to vector<8x8xf32>
    %20 = vector.shape_cast %17 : vector<8x8xf32> to vector<1x8x8xf32>
    tpu.vector_store %arg7[%c0_11, %c16, %c0_12], %20 {strides = array<i32>} : memref<2x64x8xf32, #tpu.memory_space<vmem>>, vector<1x8x8xf32>,
    %21 = vector.extract_strided_slice %2 {offsets = [0, 24], sizes = [8, 8], strides = [1, 1]} : vector<16x192xf32> to vector<8x8xf32>
    %22 = vector.extract_strided_slice %2 {offsets = [0, 88], sizes = [8, 8], strides = [1, 1]} : vector<16x192xf32> to vector<8x8xf32>
    %cst_13 = arith.constant dense<0.000000e+00> : vector<8x8xf32>
    %23 = tpu.matmul %21, %22, %cst_13 {dimension_numbers = #tpu.dot_dimension_numbers<[1], [1], [0], [0], [0, 0, 1, 0], [], []>} : vector<8x8xf32>, vector<8x8xf32>, vector<8x8xf32> -> vector<8x8xf32>
    %c0_14 = arith.constant 0 : index
    %c24 = arith.constant 24 : index
    %c0_15 = arith.constant 0 : index
    %24 = vector.load %arg7[%c0_14, %c24, %c0_15] : memref<2x64x8xf32, #tpu.memory_space<vmem>>, vector<1x8x8xf32>
    %25 = vector.shape_cast %24 : vector<1x8x8xf32> to vector<8x8xf32>
    %26 = vector.shape_cast %23 : vector<8x8xf32> to vector<1x8x8xf32>
    tpu.vector_store %arg7[%c0_14, %c24, %c0_15], %26 {strides = array<i32>} : memref<2x64x8xf32, #tpu.memory_space<vmem>>, vector<1x8x8xf32>,
    %27 = vector.extract_strided_slice %2 {offsets = [0, 32], sizes = [8, 8], strides = [1, 1]} : vector<16x192xf32> to vector<8x8xf32>
    %28 = vector.extract_strided_slice %2 {offsets = [0, 96], sizes = [8, 8], strides = [1, 1]} : vector<16x192xf32> to vector<8x8xf32>
    %cst_16 = arith.constant dense<0.000000e+00> : vector<8x8xf32>
    %29 = tpu.matmul %27, %28, %cst_16 {dimension_numbers = #tpu.dot_dimension_numbers<[1], [1], [0], [0], [0, 0, 1, 0], [], []>} : vector<8x8xf32>, vector<8x8xf32>, vector<8x8xf32> -> vector<8x8xf32>
    %c0_17 = arith.constant 0 : index
    %c32 = arith.constant 32 : index
    %c0_18 = arith.constant 0 : index
    %30 = vector.load %arg7[%c0_17, %c32, %c0_18] : memref<2x64x8xf32, #tpu.memory_space<vmem>>, vector<1x8x8xf32>
    %31 = vector.shape_cast %30 : vector<1x8x8xf32> to vector<8x8xf32>
    %32 = vector.shape_cast %29 : vector<8x8xf32> to vector<1x8x8xf32>
    tpu.vector_store %arg7[%c0_17, %c32, %c0_18], %32 {strides = array<i32>} : memref<2x64x8xf32, #tpu.memory_space<vmem>>, vector<1x8x8xf32>,
    %33 = vector.extract_strided_slice %2 {offsets = [0, 40], sizes = [8, 8], strides = [1, 1]} : vector<16x192xf32> to vector<8x8xf32>
    %34 = vector.extract_strided_slice %2 {offsets = [0, 104], sizes = [8, 8], strides = [1, 1]} : vector<16x192xf32> to vector<8x8xf32>
    %cst_19 = arith.constant dense<0.000000e+00> : vector<8x8xf32>
    %35 = tpu.matmul %33, %34, %cst_19 {dimension_numbers = #tpu.dot_dimension_numbers<[1], [1], [0], [0], [0, 0, 1, 0], [], []>} : vector<8x8xf32>, vector<8x8xf32>, vector<8x8xf32> -> vector<8x8xf32>
    %c0_20 = arith.constant 0 : index
    %c40 = arith.constant 40 : index
    %c0_21 = arith.constant 0 : index
    %36 = vector.load %arg7[%c0_20, %c40, %c0_21] : memref<2x64x8xf32, #tpu.memory_space<vmem>>, vector<1x8x8xf32>
    %37 = vector.shape_cast %36 : vector<1x8x8xf32> to vector<8x8xf32>
    %38 = vector.shape_cast %35 : vector<8x8xf32> to vector<1x8x8xf32>
    tpu.vector_store %arg7[%c0_20, %c40, %c0_21], %38 {strides = array<i32>} : memref<2x64x8xf32, #tpu.memory_space<vmem>>, vector<1x8x8xf32>,
    %39 = vector.extract_strided_slice %2 {offsets = [0, 48], sizes = [8, 8], strides = [1, 1]} : vector<16x192xf32> to vector<8x8xf32>
    %40 = vector.extract_strided_slice %2 {offsets = [0, 112], sizes = [8, 8], strides = [1, 1]} : vector<16x192xf32> to vector<8x8xf32>
    %cst_22 = arith.constant dense<0.000000e+00> : vector<8x8xf32>
    %41 = tpu.matmul %39, %40, %cst_22 {dimension_numbers = #tpu.dot_dimension_numbers<[1], [1], [0], [0], [0, 0, 1, 0], [], []>} : vector<8x8xf32>, vector<8x8xf32>, vector<8x8xf32> -> vector<8x8xf32>
    %c0_23 = arith.constant 0 : index
    %c48 = arith.constant 48 : index
    %c0_24 = arith.constant 0 : index
    %42 = vector.load %arg7[%c0_23, %c48, %c0_24] : memref<2x64x8xf32, #tpu.memory_space<vmem>>, vector<1x8x8xf32>
    %43 = vector.shape_cast %42 : vector<1x8x8xf32> to vector<8x8xf32>
    %44 = vector.shape_cast %41 : vector<8x8xf32> to vector<1x8x8xf32>
    tpu.vector_store %arg7[%c0_23, %c48, %c0_24], %44 {strides = array<i32>} : memref<2x64x8xf32, #tpu.memory_space<vmem>>, vector<1x8x8xf32>,
    %45 = vector.extract_strided_slice %2 {offsets = [0, 56], sizes = [8, 8], strides = [1, 1]} : vector<16x192xf32> to vector<8x8xf32>
    %46 = vector.extract_strided_slice %2 {offsets = [0, 120], sizes = [8, 8], strides = [1, 1]} : vector<16x192xf32> to vector<8x8xf32>
    %cst_25 = arith.constant dense<0.000000e+00> : vector<8x8xf32>
    %47 = tpu.matmul %45, %46, %cst_25 {dimension_numbers = #tpu.dot_dimension_numbers<[1], [1], [0], [0], [0, 0, 1, 0], [], []>} : vector<8x8xf32>, vector<8x8xf32>, vector<8x8xf32> -> vector<8x8xf32>
    %c0_26 = arith.constant 0 : index
    %c56 = arith.constant 56 : index
    %c0_27 = arith.constant 0 : index
    %48 = vector.load %arg7[%c0_26, %c56, %c0_27] : memref<2x64x8xf32, #tpu.memory_space<vmem>>, vector<1x8x8xf32>
    %49 = vector.shape_cast %48 : vector<1x8x8xf32> to vector<8x8xf32>
    %50 = vector.shape_cast %47 : vector<8x8xf32> to vector<1x8x8xf32>
    tpu.vector_store %arg7[%c0_26, %c56, %c0_27], %50 {strides = array<i32>} : memref<2x64x8xf32, #tpu.memory_space<vmem>>, vector<1x8x8xf32>,
    %51 = vector.extract_strided_slice %2 {offsets = [8, 0], sizes = [8, 8], strides = [1, 1]} : vector<16x192xf32> to vector<8x8xf32>
    %52 = vector.extract_strided_slice %2 {offsets = [8, 64], sizes = [8, 8], strides = [1, 1]} : vector<16x192xf32> to vector<8x8xf32>
    %cst_28 = arith.constant dense<0.000000e+00> : vector<8x8xf32>
    %53 = tpu.matmul %51, %52, %cst_28 {dimension_numbers = #tpu.dot_dimension_numbers<[1], [1], [0], [0], [0, 0, 1, 0], [], []>} : vector<8x8xf32>, vector<8x8xf32>, vector<8x8xf32> -> vector<8x8xf32>
    %c1 = arith.constant 1 : index
    %c0_29 = arith.constant 0 : index
    %c0_30 = arith.constant 0 : index
    %54 = vector.load %arg7[%c1, %c0_29, %c0_30] : memref<2x64x8xf32, #tpu.memory_space<vmem>>, vector<1x8x8xf32>
    %55 = vector.shape_cast %54 : vector<1x8x8xf32> to vector<8x8xf32>
    %56 = vector.shape_cast %53 : vector<8x8xf32> to vector<1x8x8xf32>
    tpu.vector_store %arg7[%c1, %c0_29, %c0_30], %56 {strides = array<i32>} : memref<2x64x8xf32, #tpu.memory_space<vmem>>, vector<1x8x8xf32>,
    %57 = vector.extract_strided_slice %2 {offsets = [8, 8], sizes = [8, 8], strides = [1, 1]} : vector<16x192xf32> to vector<8x8xf32>
    %58 = vector.extract_strided_slice %2 {offsets = [8, 72], sizes = [8, 8], strides = [1, 1]} : vector<16x192xf32> to vector<8x8xf32>
    %cst_31 = arith.constant dense<0.000000e+00> : vector<8x8xf32>
    %59 = tpu.matmul %57, %58, %cst_31 {dimension_numbers = #tpu.dot_dimension_numbers<[1], [1], [0], [0], [0, 0, 1, 0], [], []>} : vector<8x8xf32>, vector<8x8xf32>, vector<8x8xf32> -> vector<8x8xf32>
    %c1_32 = arith.constant 1 : index
    %c8_33 = arith.constant 8 : index
    %c0_34 = arith.constant 0 : index
    %60 = vector.load %arg7[%c1_32, %c8_33, %c0_34] : memref<2x64x8xf32, #tpu.memory_space<vmem>>, vector<1x8x8xf32>
    %61 = vector.shape_cast %60 : vector<1x8x8xf32> to vector<8x8xf32>
    %62 = vector.shape_cast %59 : vector<8x8xf32> to vector<1x8x8xf32>
    tpu.vector_store %arg7[%c1_32, %c8_33, %c0_34], %62 {strides = array<i32>} : memref<2x64x8xf32, #tpu.memory_space<vmem>>, vector<1x8x8xf32>,
    %63 = vector.extract_strided_slice %2 {offsets = [8, 16], sizes = [8, 8], strides = [1, 1]} : vector<16x192xf32> to vector<8x8xf32>
    %64 = vector.extract_strided_slice %2 {offsets = [8, 80], sizes = [8, 8], strides = [1, 1]} : vector<16x192xf32> to vector<8x8xf32>
    %cst_35 = arith.constant dense<0.000000e+00> : vector<8x8xf32>
    %65 = tpu.matmul %63, %64, %cst_35 {dimension_numbers = #tpu.dot_dimension_numbers<[1], [1], [0], [0], [0, 0, 1, 0], [], []>} : vector<8x8xf32>, vector<8x8xf32>, vector<8x8xf32> -> vector<8x8xf32>
    %c1_36 = arith.constant 1 : index
    %c16_37 = arith.constant 16 : index
    %c0_38 = arith.constant 0 : index
    %66 = vector.load %arg7[%c1_36, %c16_37, %c0_38] : memref<2x64x8xf32, #tpu.memory_space<vmem>>, vector<1x8x8xf32>
    %67 = vector.shape_cast %66 : vector<1x8x8xf32> to vector<8x8xf32>
    %68 = vector.shape_cast %65 : vector<8x8xf32> to vector<1x8x8xf32>
    tpu.vector_store %arg7[%c1_36, %c16_37, %c0_38], %68 {strides = array<i32>} : memref<2x64x8xf32, #tpu.memory_space<vmem>>, vector<1x8x8xf32>,
    %69 = vector.extract_strided_slice %2 {offsets = [8, 24], sizes = [8, 8], strides = [1, 1]} : vector<16x192xf32> to vector<8x8xf32>
    %70 = vector.extract_strided_slice %2 {offsets = [8, 88], sizes = [8, 8], strides = [1, 1]} : vector<16x192xf32> to vector<8x8xf32>
    %cst_39 = arith.constant dense<0.000000e+00> : vector<8x8xf32>
    %71 = tpu.matmul %69, %70, %cst_39 {dimension_numbers = #tpu.dot_dimension_numbers<[1], [1], [0], [0], [0, 0, 1, 0], [], []>} : vector<8x8xf32>, vector<8x8xf32>, vector<8x8xf32> -> vector<8x8xf32>
    %c1_40 = arith.constant 1 : index
    %c24_41 = arith.constant 24 : index
    %c0_42 = arith.constant 0 : index
    %72 = vector.load %arg7[%c1_40, %c24_41, %c0_42] : memref<2x64x8xf32, #tpu.memory_space<vmem>>, vector<1x8x8xf32>
    %73 = vector.shape_cast %72 : vector<1x8x8xf32> to vector<8x8xf32>
    %74 = vector.shape_cast %71 : vector<8x8xf32> to vector<1x8x8xf32>
    tpu.vector_store %arg7[%c1_40, %c24_41, %c0_42], %74 {strides = array<i32>} : memref<2x64x8xf32, #tpu.memory_space<vmem>>, vector<1x8x8xf32>,
    %75 = vector.extract_strided_slice %2 {offsets = [8, 32], sizes = [8, 8], strides = [1, 1]} : vector<16x192xf32> to vector<8x8xf32>
    %76 = vector.extract_strided_slice %2 {offsets = [8, 96], sizes = [8, 8], strides = [1, 1]} : vector<16x192xf32> to vector<8x8xf32>
    %cst_43 = arith.constant dense<0.000000e+00> : vector<8x8xf32>
    %77 = tpu.matmul %75, %76, %cst_43 {dimension_numbers = #tpu.dot_dimension_numbers<[1], [1], [0], [0], [0, 0, 1, 0], [], []>} : vector<8x8xf32>, vector<8x8xf32>, vector<8x8xf32> -> vector<8x8xf32>
    %c1_44 = arith.constant 1 : index
    %c32_45 = arith.constant 32 : index
    %c0_46 = arith.constant 0 : index
    %78 = vector.load %arg7[%c1_44, %c32_45, %c0_46] : memref<2x64x8xf32, #tpu.memory_space<vmem>>, vector<1x8x8xf32>
    %79 = vector.shape_cast %78 : vector<1x8x8xf32> to vector<8x8xf32>
    %80 = vector.shape_cast %77 : vector<8x8xf32> to vector<1x8x8xf32>
    tpu.vector_store %arg7[%c1_44, %c32_45, %c0_46], %80 {strides = array<i32>} : memref<2x64x8xf32, #tpu.memory_space<vmem>>, vector<1x8x8xf32>,
    %81 = vector.extract_strided_slice %2 {offsets = [8, 40], sizes = [8, 8], strides = [1, 1]} : vector<16x192xf32> to vector<8x8xf32>
    %82 = vector.extract_strided_slice %2 {offsets = [8, 104], sizes = [8, 8], strides = [1, 1]} : vector<16x192xf32> to vector<8x8xf32>
    %cst_47 = arith.constant dense<0.000000e+00> : vector<8x8xf32>
    %83 = tpu.matmul %81, %82, %cst_47 {dimension_numbers = #tpu.dot_dimension_numbers<[1], [1], [0], [0], [0, 0, 1, 0], [], []>} : vector<8x8xf32>, vector<8x8xf32>, vector<8x8xf32> -> vector<8x8xf32>
    %c1_48 = arith.constant 1 : index
    %c40_49 = arith.constant 40 : index
    %c0_50 = arith.constant 0 : index
    %84 = vector.load %arg7[%c1_48, %c40_49, %c0_50] : memref<2x64x8xf32, #tpu.memory_space<vmem>>, vector<1x8x8xf32>
    %85 = vector.shape_cast %84 : vector<1x8x8xf32> to vector<8x8xf32>
    %86 = vector.shape_cast %83 : vector<8x8xf32> to vector<1x8x8xf32>
    tpu.vector_store %arg7[%c1_48, %c40_49, %c0_50], %86 {strides = array<i32>} : memref<2x64x8xf32, #tpu.memory_space<vmem>>, vector<1x8x8xf32>,
    %87 = vector.extract_strided_slice %2 {offsets = [8, 48], sizes = [8, 8], strides = [1, 1]} : vector<16x192xf32> to vector<8x8xf32>
    %88 = vector.extract_strided_slice %2 {offsets = [8, 112], sizes = [8, 8], strides = [1, 1]} : vector<16x192xf32> to vector<8x8xf32>
    %cst_51 = arith.constant dense<0.000000e+00> : vector<8x8xf32>
    %89 = tpu.matmul %87, %88, %cst_51 {dimension_numbers = #tpu.dot_dimension_numbers<[1], [1], [0], [0], [0, 0, 1, 0], [], []>} : vector<8x8xf32>, vector<8x8xf32>, vector<8x8xf32> -> vector<8x8xf32>
    %c1_52 = arith.constant 1 : index
    %c48_53 = arith.constant 48 : index
    %c0_54 = arith.constant 0 : index
    %90 = vector.load %arg7[%c1_52, %c48_53, %c0_54] : memref<2x64x8xf32, #tpu.memory_space<vmem>>, vector<1x8x8xf32>
    %91 = vector.shape_cast %90 : vector<1x8x8xf32> to vector<8x8xf32>
    %92 = vector.shape_cast %89 : vector<8x8xf32> to vector<1x8x8xf32>
    tpu.vector_store %arg7[%c1_52, %c48_53, %c0_54], %92 {strides = array<i32>} : memref<2x64x8xf32, #tpu.memory_space<vmem>>, vector<1x8x8xf32>,
    %93 = vector.extract_strided_slice %2 {offsets = [8, 56], sizes = [8, 8], strides = [1, 1]} : vector<16x192xf32> to vector<8x8xf32>
    %94 = vector.extract_strided_slice %2 {offsets = [8, 120], sizes = [8, 8], strides = [1, 1]} : vector<16x192xf32> to vector<8x8xf32>
    %cst_55 = arith.constant dense<0.000000e+00> : vector<8x8xf32>
    %95 = tpu.matmul %93, %94, %cst_55 {dimension_numbers = #tpu.dot_dimension_numbers<[1], [1], [0], [0], [0, 0, 1, 0], [], []>} : vector<8x8xf32>, vector<8x8xf32>, vector<8x8xf32> -> vector<8x8xf32>
    %c1_56 = arith.constant 1 : index
    %c56_57 = arith.constant 56 : index
    %c0_58 = arith.constant 0 : index
    %96 = vector.load %arg7[%c1_56, %c56_57, %c0_58] : memref<2x64x8xf32, #tpu.memory_space<vmem>>, vector<1x8x8xf32>
    %97 = vector.shape_cast %96 : vector<1x8x8xf32> to vector<8x8xf32>
    %98 = vector.shape_cast %95 : vector<8x8xf32> to vector<1x8x8xf32>
    tpu.vector_store %arg7[%c1_56, %c56_57, %c0_58], %98 {strides = array<i32>} : memref<2x64x8xf32, #tpu.memory_space<vmem>>, vector<1x8x8xf32>,
    %c0_59 = arith.constant 0 : index
    %c0_60 = arith.constant 0 : index
    %c0_61 = arith.constant 0 : index
    %99 = vector.load %arg7[%c0_59, %c0_60, %c0_61] : memref<2x64x8xf32, #tpu.memory_space<vmem>>, vector<2x64x8xf32>
    %c0_62 = arith.constant 0 : index
    %c0_63 = arith.constant 0 : index
    %c0_64 = arith.constant 0 : index
    %100 = vector.load %arg5[%c0_62, %c0_63, %c0_64] : memref<2x1x8xf32, #tpu.memory_space<vmem>>, vector<2x1x8xf32>
    %101 = vector.broadcast %100 : vector<2x1x8xf32> to vector<2x64x8xf32>
    %102 = arith.addf %99, %101 : vector<2x64x8xf32>
    %cst_65 = arith.constant dense<0xFF800000> : vector<2x64xf32>
    %103 = vector.multi_reduction <maximumf>, %102, %cst_65 [2] : vector<2x64x8xf32> to vector<2x64xf32>
    %104 = vector.shape_cast %103 : vector<2x64xf32> to vector<2x64x1xf32>
    %105 = vector.broadcast %104 : vector<2x64x1xf32> to vector<2x64x8xf32>
    %106 = arith.subf %102, %105 : vector<2x64x8xf32>
    %107 = math.exp %106 : vector<2x64x8xf32>
    %cst_66 = arith.constant dense<0.000000e+00> : vector<2x64xf32>
    %108 = vector.multi_reduction <add>, %107, %cst_66 [2] : vector<2x64x8xf32> to vector<2x64xf32>
    %109 = vector.shape_cast %108 : vector<2x64xf32> to vector<2x64x1xf32>
    %110 = vector.broadcast %109 : vector<2x64x1xf32> to vector<2x64x8xf32>
    %111 = arith.divf %107, %110 : vector<2x64x8xf32>
    %112 = vector.extract_strided_slice %111 {offsets = [0, 0, 0], sizes = [1, 8, 8], strides = [1, 1, 1]} : vector<2x64x8xf32> to vector<1x8x8xf32>
    %113 = vector.shape_cast %112 : vector<1x8x8xf32> to vector<8x8xf32>
    %114 = vector.extract_strided_slice %2 {offsets = [0, 128], sizes = [8, 8], strides = [1, 1]} : vector<16x192xf32> to vector<8x8xf32>
    %cst_67 = arith.constant dense<0.000000e+00> : vector<8x8xf32>
    %115 = tpu.matmul %113, %114, %cst_67 {dimension_numbers = #tpu.dot_dimension_numbers<[1], [0], [0], [1], [0, 0, 1, 1], [], []>} : vector<8x8xf32>, vector<8x8xf32>, vector<8x8xf32> -> vector<8x8xf32>
    %c0_68 = arith.constant 0 : index
    %c0_69 = arith.constant 0 : index
    %116 = vector.load %arg8[%c0_68, %c0_69] : memref<16x64xf32, #tpu.memory_space<vmem>>, vector<8x8xf32>
    tpu.vector_store %arg8[%c0_68, %c0_69], %115 {strides = array<i32>} : memref<16x64xf32, #tpu.memory_space<vmem>>, vector<8x8xf32>,
    %117 = vector.extract_strided_slice %111 {offsets = [0, 8, 0], sizes = [1, 8, 8], strides = [1, 1, 1]} : vector<2x64x8xf32> to vector<1x8x8xf32>
    %118 = vector.shape_cast %117 : vector<1x8x8xf32> to vector<8x8xf32>
    %119 = vector.extract_strided_slice %2 {offsets = [0, 136], sizes = [8, 8], strides = [1, 1]} : vector<16x192xf32> to vector<8x8xf32>
    %cst_70 = arith.constant dense<0.000000e+00> : vector<8x8xf32>
    %120 = tpu.matmul %118, %119, %cst_70 {dimension_numbers = #tpu.dot_dimension_numbers<[1], [0], [0], [1], [0, 0, 1, 1], [], []>} : vector<8x8xf32>, vector<8x8xf32>, vector<8x8xf32> -> vector<8x8xf32>
    %c0_71 = arith.constant 0 : index
    %c8_72 = arith.constant 8 : index
    %121 = vector.load %arg8[%c0_71, %c8_72] : memref<16x64xf32, #tpu.memory_space<vmem>>, vector<8x8xf32>
    tpu.vector_store %arg8[%c0_71, %c8_72], %120 {strides = array<i32>} : memref<16x64xf32, #tpu.memory_space<vmem>>, vector<8x8xf32>,
    %122 = vector.extract_strided_slice %111 {offsets = [0, 16, 0], sizes = [1, 8, 8], strides = [1, 1, 1]} : vector<2x64x8xf32> to vector<1x8x8xf32>
    %123 = vector.shape_cast %122 : vector<1x8x8xf32> to vector<8x8xf32>
    %124 = vector.extract_strided_slice %2 {offsets = [0, 144], sizes = [8, 8], strides = [1, 1]} : vector<16x192xf32> to vector<8x8xf32>
    %cst_73 = arith.constant dense<0.000000e+00> : vector<8x8xf32>
    %125 = tpu.matmul %123, %124, %cst_73 {dimension_numbers = #tpu.dot_dimension_numbers<[1], [0], [0], [1], [0, 0, 1, 1], [], []>} : vector<8x8xf32>, vector<8x8xf32>, vector<8x8xf32> -> vector<8x8xf32>
    %c0_74 = arith.constant 0 : index
    %c16_75 = arith.constant 16 : index
    %126 = vector.load %arg8[%c0_74, %c16_75] : memref<16x64xf32, #tpu.memory_space<vmem>>, vector<8x8xf32>
    tpu.vector_store %arg8[%c0_74, %c16_75], %125 {strides = array<i32>} : memref<16x64xf32, #tpu.memory_space<vmem>>, vector<8x8xf32>,
    %127 = vector.extract_strided_slice %111 {offsets = [0, 24, 0], sizes = [1, 8, 8], strides = [1, 1, 1]} : vector<2x64x8xf32> to vector<1x8x8xf32>
    %128 = vector.shape_cast %127 : vector<1x8x8xf32> to vector<8x8xf32>
    %129 = vector.extract_strided_slice %2 {offsets = [0, 152], sizes = [8, 8], strides = [1, 1]} : vector<16x192xf32> to vector<8x8xf32>
    %cst_76 = arith.constant dense<0.000000e+00> : vector<8x8xf32>
    %130 = tpu.matmul %128, %129, %cst_76 {dimension_numbers = #tpu.dot_dimension_numbers<[1], [0], [0], [1], [0, 0, 1, 1], [], []>} : vector<8x8xf32>, vector<8x8xf32>, vector<8x8xf32> -> vector<8x8xf32>
    %c0_77 = arith.constant 0 : index
    %c24_78 = arith.constant 24 : index
    %131 = vector.load %arg8[%c0_77, %c24_78] : memref<16x64xf32, #tpu.memory_space<vmem>>, vector<8x8xf32>
    tpu.vector_store %arg8[%c0_77, %c24_78], %130 {strides = array<i32>} : memref<16x64xf32, #tpu.memory_space<vmem>>, vector<8x8xf32>,
    %132 = vector.extract_strided_slice %111 {offsets = [0, 32, 0], sizes = [1, 8, 8], strides = [1, 1, 1]} : vector<2x64x8xf32> to vector<1x8x8xf32>
    %133 = vector.shape_cast %132 : vector<1x8x8xf32> to vector<8x8xf32>
    %134 = vector.extract_strided_slice %2 {offsets = [0, 160], sizes = [8, 8], strides = [1, 1]} : vector<16x192xf32> to vector<8x8xf32>
    %cst_79 = arith.constant dense<0.000000e+00> : vector<8x8xf32>
    %135 = tpu.matmul %133, %134, %cst_79 {dimension_numbers = #tpu.dot_dimension_numbers<[1], [0], [0], [1], [0, 0, 1, 1], [], []>} : vector<8x8xf32>, vector<8x8xf32>, vector<8x8xf32> -> vector<8x8xf32>
    %c0_80 = arith.constant 0 : index
    %c32_81 = arith.constant 32 : index
    %136 = vector.load %arg8[%c0_80, %c32_81] : memref<16x64xf32, #tpu.memory_space<vmem>>, vector<8x8xf32>
    tpu.vector_store %arg8[%c0_80, %c32_81], %135 {strides = array<i32>} : memref<16x64xf32, #tpu.memory_space<vmem>>, vector<8x8xf32>,
    %137 = vector.extract_strided_slice %111 {offsets = [0, 40, 0], sizes = [1, 8, 8], strides = [1, 1, 1]} : vector<2x64x8xf32> to vector<1x8x8xf32>
    %138 = vector.shape_cast %137 : vector<1x8x8xf32> to vector<8x8xf32>
    %139 = vector.extract_strided_slice %2 {offsets = [0, 168], sizes = [8, 8], strides = [1, 1]} : vector<16x192xf32> to vector<8x8xf32>
    %cst_82 = arith.constant dense<0.000000e+00> : vector<8x8xf32>
    %140 = tpu.matmul %138, %139, %cst_82 {dimension_numbers = #tpu.dot_dimension_numbers<[1], [0], [0], [1], [0, 0, 1, 1], [], []>} : vector<8x8xf32>, vector<8x8xf32>, vector<8x8xf32> -> vector<8x8xf32>
    %c0_83 = arith.constant 0 : index
    %c40_84 = arith.constant 40 : index
    %141 = vector.load %arg8[%c0_83, %c40_84] : memref<16x64xf32, #tpu.memory_space<vmem>>, vector<8x8xf32>
    tpu.vector_store %arg8[%c0_83, %c40_84], %140 {strides = array<i32>} : memref<16x64xf32, #tpu.memory_space<vmem>>, vector<8x8xf32>,
    %142 = vector.extract_strided_slice %111 {offsets = [0, 48, 0], sizes = [1, 8, 8], strides = [1, 1, 1]} : vector<2x64x8xf32> to vector<1x8x8xf32>
    %143 = vector.shape_cast %142 : vector<1x8x8xf32> to vector<8x8xf32>
    %144 = vector.extract_strided_slice %2 {offsets = [0, 176], sizes = [8, 8], strides = [1, 1]} : vector<16x192xf32> to vector<8x8xf32>
    %cst_85 = arith.constant dense<0.000000e+00> : vector<8x8xf32>
    %145 = tpu.matmul %143, %144, %cst_85 {dimension_numbers = #tpu.dot_dimension_numbers<[1], [0], [0], [1], [0, 0, 1, 1], [], []>} : vector<8x8xf32>, vector<8x8xf32>, vector<8x8xf32> -> vector<8x8xf32>
    %c0_86 = arith.constant 0 : index
    %c48_87 = arith.constant 48 : index
    %146 = vector.load %arg8[%c0_86, %c48_87] : memref<16x64xf32, #tpu.memory_space<vmem>>, vector<8x8xf32>
    tpu.vector_store %arg8[%c0_86, %c48_87], %145 {strides = array<i32>} : memref<16x64xf32, #tpu.memory_space<vmem>>, vector<8x8xf32>,
    %147 = vector.extract_strided_slice %111 {offsets = [0, 56, 0], sizes = [1, 8, 8], strides = [1, 1, 1]} : vector<2x64x8xf32> to vector<1x8x8xf32>
    %148 = vector.shape_cast %147 : vector<1x8x8xf32> to vector<8x8xf32>
    %149 = vector.extract_strided_slice %2 {offsets = [0, 184], sizes = [8, 8], strides = [1, 1]} : vector<16x192xf32> to vector<8x8xf32>
    %cst_88 = arith.constant dense<0.000000e+00> : vector<8x8xf32>
    %150 = tpu.matmul %148, %149, %cst_88 {dimension_numbers = #tpu.dot_dimension_numbers<[1], [0], [0], [1], [0, 0, 1, 1], [], []>} : vector<8x8xf32>, vector<8x8xf32>, vector<8x8xf32> -> vector<8x8xf32>
    %c0_89 = arith.constant 0 : index
    %c56_90 = arith.constant 56 : index
    %151 = vector.load %arg8[%c0_89, %c56_90] : memref<16x64xf32, #tpu.memory_space<vmem>>, vector<8x8xf32>
    tpu.vector_store %arg8[%c0_89, %c56_90], %150 {strides = array<i32>} : memref<16x64xf32, #tpu.memory_space<vmem>>, vector<8x8xf32>,
    %152 = vector.extract_strided_slice %111 {offsets = [1, 0, 0], sizes = [1, 8, 8], strides = [1, 1, 1]} : vector<2x64x8xf32> to vector<1x8x8xf32>
    %153 = vector.shape_cast %152 : vector<1x8x8xf32> to vector<8x8xf32>
    %154 = vector.extract_strided_slice %2 {offsets = [8, 128], sizes = [8, 8], strides = [1, 1]} : vector<16x192xf32> to vector<8x8xf32>
    %cst_91 = arith.constant dense<0.000000e+00> : vector<8x8xf32>
    %155 = tpu.matmul %153, %154, %cst_91 {dimension_numbers = #tpu.dot_dimension_numbers<[1], [0], [0], [1], [0, 0, 1, 1], [], []>} : vector<8x8xf32>, vector<8x8xf32>, vector<8x8xf32> -> vector<8x8xf32>
    %c8_92 = arith.constant 8 : index
    %c0_93 = arith.constant 0 : index
    %156 = vector.load %arg8[%c8_92, %c0_93] : memref<16x64xf32, #tpu.memory_space<vmem>>, vector<8x8xf32>
    tpu.vector_store %arg8[%c8_92, %c0_93], %155 {strides = array<i32>} : memref<16x64xf32, #tpu.memory_space<vmem>>, vector<8x8xf32>,
    %157 = vector.extract_strided_slice %111 {offsets = [1, 8, 0], sizes = [1, 8, 8], strides = [1, 1, 1]} : vector<2x64x8xf32> to vector<1x8x8xf32>
    %158 = vector.shape_cast %157 : vector<1x8x8xf32> to vector<8x8xf32>
    %159 = vector.extract_strided_slice %2 {offsets = [8, 136], sizes = [8, 8], strides = [1, 1]} : vector<16x192xf32> to vector<8x8xf32>
    %cst_94 = arith.constant dense<0.000000e+00> : vector<8x8xf32>
    %160 = tpu.matmul %158, %159, %cst_94 {dimension_numbers = #tpu.dot_dimension_numbers<[1], [0], [0], [1], [0, 0, 1, 1], [], []>} : vector<8x8xf32>, vector<8x8xf32>, vector<8x8xf32> -> vector<8x8xf32>
    %c8_95 = arith.constant 8 : index
    %c8_96 = arith.constant 8 : index
    %161 = vector.load %arg8[%c8_95, %c8_96] : memref<16x64xf32, #tpu.memory_space<vmem>>, vector<8x8xf32>
    tpu.vector_store %arg8[%c8_95, %c8_96], %160 {strides = array<i32>} : memref<16x64xf32, #tpu.memory_space<vmem>>, vector<8x8xf32>,
    %162 = vector.extract_strided_slice %111 {offsets = [1, 16, 0], sizes = [1, 8, 8], strides = [1, 1, 1]} : vector<2x64x8xf32> to vector<1x8x8xf32>
    %163 = vector.shape_cast %162 : vector<1x8x8xf32> to vector<8x8xf32>
    %164 = vector.extract_strided_slice %2 {offsets = [8, 144], sizes = [8, 8], strides = [1, 1]} : vector<16x192xf32> to vector<8x8xf32>
    %cst_97 = arith.constant dense<0.000000e+00> : vector<8x8xf32>
    %165 = tpu.matmul %163, %164, %cst_97 {dimension_numbers = #tpu.dot_dimension_numbers<[1], [0], [0], [1], [0, 0, 1, 1], [], []>} : vector<8x8xf32>, vector<8x8xf32>, vector<8x8xf32> -> vector<8x8xf32>
    %c8_98 = arith.constant 8 : index
    %c16_99 = arith.constant 16 : index
    %166 = vector.load %arg8[%c8_98, %c16_99] : memref<16x64xf32, #tpu.memory_space<vmem>>, vector<8x8xf32>
    tpu.vector_store %arg8[%c8_98, %c16_99], %165 {strides = array<i32>} : memref<16x64xf32, #tpu.memory_space<vmem>>, vector<8x8xf32>,
    %167 = vector.extract_strided_slice %111 {offsets = [1, 24, 0], sizes = [1, 8, 8], strides = [1, 1, 1]} : vector<2x64x8xf32> to vector<1x8x8xf32>
    %168 = vector.shape_cast %167 : vector<1x8x8xf32> to vector<8x8xf32>
    %169 = vector.extract_strided_slice %2 {offsets = [8, 152], sizes = [8, 8], strides = [1, 1]} : vector<16x192xf32> to vector<8x8xf32>
    %cst_100 = arith.constant dense<0.000000e+00> : vector<8x8xf32>
    %170 = tpu.matmul %168, %169, %cst_100 {dimension_numbers = #tpu.dot_dimension_numbers<[1], [0], [0], [1], [0, 0, 1, 1], [], []>} : vector<8x8xf32>, vector<8x8xf32>, vector<8x8xf32> -> vector<8x8xf32>
    %c8_101 = arith.constant 8 : index
    %c24_102 = arith.constant 24 : index
    %171 = vector.load %arg8[%c8_101, %c24_102] : memref<16x64xf32, #tpu.memory_space<vmem>>, vector<8x8xf32>
    tpu.vector_store %arg8[%c8_101, %c24_102], %170 {strides = array<i32>} : memref<16x64xf32, #tpu.memory_space<vmem>>, vector<8x8xf32>,
    %172 = vector.extract_strided_slice %111 {offsets = [1, 32, 0], sizes = [1, 8, 8], strides = [1, 1, 1]} : vector<2x64x8xf32> to vector<1x8x8xf32>
    %173 = vector.shape_cast %172 : vector<1x8x8xf32> to vector<8x8xf32>
    %174 = vector.extract_strided_slice %2 {offsets = [8, 160], sizes = [8, 8], strides = [1, 1]} : vector<16x192xf32> to vector<8x8xf32>
    %cst_103 = arith.constant dense<0.000000e+00> : vector<8x8xf32>
    %175 = tpu.matmul %173, %174, %cst_103 {dimension_numbers = #tpu.dot_dimension_numbers<[1], [0], [0], [1], [0, 0, 1, 1], [], []>} : vector<8x8xf32>, vector<8x8xf32>, vector<8x8xf32> -> vector<8x8xf32>
    %c8_104 = arith.constant 8 : index
    %c32_105 = arith.constant 32 : index
    %176 = vector.load %arg8[%c8_104, %c32_105] : memref<16x64xf32, #tpu.memory_space<vmem>>, vector<8x8xf32>
    tpu.vector_store %arg8[%c8_104, %c32_105], %175 {strides = array<i32>} : memref<16x64xf32, #tpu.memory_space<vmem>>, vector<8x8xf32>,
    %177 = vector.extract_strided_slice %111 {offsets = [1, 40, 0], sizes = [1, 8, 8], strides = [1, 1, 1]} : vector<2x64x8xf32> to vector<1x8x8xf32>
    %178 = vector.shape_cast %177 : vector<1x8x8xf32> to vector<8x8xf32>
    %179 = vector.extract_strided_slice %2 {offsets = [8, 168], sizes = [8, 8], strides = [1, 1]} : vector<16x192xf32> to vector<8x8xf32>
    %cst_106 = arith.constant dense<0.000000e+00> : vector<8x8xf32>
    %180 = tpu.matmul %178, %179, %cst_106 {dimension_numbers = #tpu.dot_dimension_numbers<[1], [0], [0], [1], [0, 0, 1, 1], [], []>} : vector<8x8xf32>, vector<8x8xf32>, vector<8x8xf32> -> vector<8x8xf32>
    %c8_107 = arith.constant 8 : index
    %c40_108 = arith.constant 40 : index
    %181 = vector.load %arg8[%c8_107, %c40_108] : memref<16x64xf32, #tpu.memory_space<vmem>>, vector<8x8xf32>
    tpu.vector_store %arg8[%c8_107, %c40_108], %180 {strides = array<i32>} : memref<16x64xf32, #tpu.memory_space<vmem>>, vector<8x8xf32>,
    %182 = vector.extract_strided_slice %111 {offsets = [1, 48, 0], sizes = [1, 8, 8], strides = [1, 1, 1]} : vector<2x64x8xf32> to vector<1x8x8xf32>
    %183 = vector.shape_cast %182 : vector<1x8x8xf32> to vector<8x8xf32>
    %184 = vector.extract_strided_slice %2 {offsets = [8, 176], sizes = [8, 8], strides = [1, 1]} : vector<16x192xf32> to vector<8x8xf32>
    %cst_109 = arith.constant dense<0.000000e+00> : vector<8x8xf32>
    %185 = tpu.matmul %183, %184, %cst_109 {dimension_numbers = #tpu.dot_dimension_numbers<[1], [0], [0], [1], [0, 0, 1, 1], [], []>} : vector<8x8xf32>, vector<8x8xf32>, vector<8x8xf32> -> vector<8x8xf32>
    %c8_110 = arith.constant 8 : index
    %c48_111 = arith.constant 48 : index
    %186 = vector.load %arg8[%c8_110, %c48_111] : memref<16x64xf32, #tpu.memory_space<vmem>>, vector<8x8xf32>
    tpu.vector_store %arg8[%c8_110, %c48_111], %185 {strides = array<i32>} : memref<16x64xf32, #tpu.memory_space<vmem>>, vector<8x8xf32>,
    %187 = vector.extract_strided_slice %111 {offsets = [1, 56, 0], sizes = [1, 8, 8], strides = [1, 1, 1]} : vector<2x64x8xf32> to vector<1x8x8xf32>
    %188 = vector.shape_cast %187 : vector<1x8x8xf32> to vector<8x8xf32>
    %189 = vector.extract_strided_slice %2 {offsets = [8, 184], sizes = [8, 8], strides = [1, 1]} : vector<16x192xf32> to vector<8x8xf32>
    %cst_112 = arith.constant dense<0.000000e+00> : vector<8x8xf32>
    %190 = tpu.matmul %188, %189, %cst_112 {dimension_numbers = #tpu.dot_dimension_numbers<[1], [0], [0], [1], [0, 0, 1, 1], [], []>} : vector<8x8xf32>, vector<8x8xf32>, vector<8x8xf32> -> vector<8x8xf32>
    %c8_113 = arith.constant 8 : index
    %c56_114 = arith.constant 56 : index
    %191 = vector.load %arg8[%c8_113, %c56_114] : memref<16x64xf32, #tpu.memory_space<vmem>>, vector<8x8xf32>
    tpu.vector_store %arg8[%c8_113, %c56_114], %190 {strides = array<i32>} : memref<16x64xf32, #tpu.memory_space<vmem>>, vector<8x8xf32>,
    %c0_115 = arith.constant 0 : index
    %c0_116 = arith.constant 0 : index
    %192 = vector.load %arg8[%c0_115, %c0_116] : memref<16x64xf32, #tpu.memory_space<vmem>>, vector<16x64xf32>
    %c0_117 = arith.constant 0 : index
    %c0_118 = arith.constant 0 : index
    %193 = vector.load %arg3[%c0_117, %c0_118] : memref<64x64xf32, #tpu.memory_space<vmem>>, vector<64x64xf32>
    %cst_119 = arith.constant dense<0.000000e+00> : vector<16x64xf32>
    %194 = tpu.matmul %192, %193, %cst_119 {dimension_numbers = #tpu.dot_dimension_numbers<[1], [0], [0], [1], [0, 0, 1, 1], [], []>} : vector<16x64xf32>, vector<64x64xf32>, vector<16x64xf32> -> vector<16x64xf32>
    %c0_120 = arith.constant 0 : index
    %c0_121 = arith.constant 0 : index
    %195 = vector.load %arg4[%c0_120, %c0_121] : memref<1x64xf32, #tpu.memory_space<vmem>>, vector<1x64xf32>
    %196 = vector.broadcast %195 : vector<1x64xf32> to vector<16x64xf32>
    %197 = arith.addf %194, %196 : vector<16x64xf32>
    %c0_122 = arith.constant 0 : index
    %c0_123 = arith.constant 0 : index
    %198 = vector.load %arg6[%c0_122, %c0_123] : memref<16x64xf32, #tpu.memory_space<vmem>>, vector<16x64xf32>
    tpu.vector_store %arg6[%c0_122, %c0_123], %197 {strides = array<i32>} : memref<16x64xf32, #tpu.memory_space<vmem>>, vector<16x64xf32>,
    return
  }
  func.func @transform_0(%arg0: i32) -> (i32, i32) {
    %c0_i32 = arith.constant 0 : i32
    %c0_i32_0 = arith.constant 0 : i32
    %c0_i32_1 = arith.constant 0 : i32
    return %c0_i32, %c0_i32_0 : i32, i32
  }
  func.func @transform_1(%arg0: i32) -> (i32, i32) {
    %c0_i32 = arith.constant 0 : i32
    %c0_i32_0 = arith.constant 0 : i32
    %c0_i32_1 = arith.constant 0 : i32
    return %c0_i32, %c0_i32_0 : i32, i32
  }
  func.func @transform_2(%arg0: i32) -> (i32, i32) {
    %c0_i32 = arith.constant 0 : i32
    %c0_i32_0 = arith.constant 0 : i32
    %c0_i32_1 = arith.constant 0 : i32
    return %c0_i32, %c0_i32_0 : i32, i32
  }
  func.func @transform_3(%arg0: i32) -> (i32, i32) {
    %c0_i32 = arith.constant 0 : i32
    %c0_i32_0 = arith.constant 0 : i32
    %c0_i32_1 = arith.constant 0 : i32
    return %c0_i32, %c0_i32_0 : i32, i32
  }
  func.func @transform_4(%arg0: i32) -> (i32, i32, i32) {
    %c0_i32 = arith.constant 0 : i32
    %c0_i32_0 = arith.constant 0 : i32
    %c0_i32_1 = arith.constant 0 : i32
    %c0_i32_2 = arith.constant 0 : i32
    return %c0_i32, %c0_i32_0, %c0_i32_1 : i32, i32, i32
  }
  func.func @transform_5(%arg0: i32) -> (i32, i32) {
    %c0_i32 = arith.constant 0 : i32
    %c0_i32_0 = arith.constant 0 : i32
    %c0_i32_1 = arith.constant 0 : i32
    return %c0_i32, %c0_i32_0 : i32, i32
  }
}

</mosaic_0001>

<llo_original>
// kernel: attention_forward.1
$region0: #{attention_forward.1}
  #allocation0 [shape = 'u32[]', space=smem, size = 0x4, offset = 0x4, fixed_abs, tag = 'smem constant byte address 0x4 - core index']
  #allocation1 [shape = 'u32[72,128]{1,0:T(1,128)}', space=vmem, size = 0x9000, scoped, tag = 'internal scratch']
  #allocation2 [shape = 'f32[2,64,8]{2,1,0:T(8,128)}', space=vmem, size = 0x10000, scoped, tag = 'scratch operand']
  #allocation3 [shape = 'f32[16,64]{1,0:T(8,128)}', space=vmem, size = 0x2000, scoped, tag = 'scratch operand']
  %s0 = inlined_call_operand.vmem [shape: f32[16,64], index: 0, kind: input, shape index: {}]
  %s1 = inlined_call_operand.vmem [shape: f32[64,192], index: 1, kind: input, shape index: {}]
  %s2 = inlined_call_operand.vmem [shape: f32[64,64], index: 2, kind: input, shape index: {}]
  %s3 = inlined_call_operand.vmem [shape: f32[1,64], index: 3, kind: input, shape index: {}]
  %s4 = inlined_call_operand.vmem [shape: f32[2,1,8], index: 4, kind: input, shape index: {}]
  %s5 = inlined_call_operand.hbm [shape: f32[16,64], index: 5, kind: output, shape index: {}]
  %s6 = sld [smem:[#allocation0]]
  $region30: #{attention_forward.1} parent=0
    _
  %s8 = ssub.s32 1, %s6
  %s9 = scalar_select 0, %s8, %s6
  $region1: #{attention_forward.1} parent=0
    #allocation4 [shape = 'u8[8192]{0}', space=vmem, size = 0x2000, scoped, tag = 'output window, operand 0, single buffered']
    #allocation5 [shape = 's32[1]{0}', space=sflag, size = 0x4, scoped, tag = 'scoped memory for attention_forward.1']
    %10 = vsyncpa [#allocation5], 0
    // Predicated region
    $region2: #{attention_forward.1} parent=1 // pred_check
      _
    $region3: #{attention_forward.1} parent=1 // pred_check_branch
      %12 = sbr.rel (0) target = $region5
    $region4: #{attention_forward.1} parent=1 // pred_region
      _
    $region5: #{attention_forward.1} parent=1 // pred_fallthru
      _
    // Predicated region
    $region6: #{attention_forward.1} parent=1 // pred_check
      _
    $region7: #{attention_forward.1} parent=1 // pred_check_branch
      %14 = sbr.rel (0) target = $region9
    $region8: #{attention_forward.1} parent=1 // pred_region
      _
    $region9: #{attention_forward.1} parent=1 // pred_fallthru
      _
    // Predicated region
    $region10: #{attention_forward.1} parent=1 // pred_check
      _
    $region11: #{attention_forward.1} parent=1 // pred_check_branch
      %16 = sbr.rel (0) target = $region13
    $region12: #{attention_forward.1} parent=1 // pred_region
      _
    $region13: #{attention_forward.1} parent=1 // pred_fallthru
      _
    // Predicated region
    $region14: #{attention_forward.1} parent=1 // pred_check
      _
    $region15: #{attention_forward.1} parent=1 // pred_check_branch
      %18 = sbr.rel (0) target = $region17
    $region16: #{attention_forward.1} parent=1 // pred_region
      _
    $region17: #{attention_forward.1} parent=1 // pred_fallthru
      _
    // Predicated region
    $region18: #{attention_forward.1} parent=1 // pred_check
      _
    $region19: #{attention_forward.1} parent=1 // pred_check_branch
      %20 = sbr.rel (0) target = $region21
    $region20: #{attention_forward.1} parent=1 // pred_region
      _
    $region21: #{attention_forward.1} parent=1 // pred_fallthru
      _
    %v21 = vld [vmem:[%s0] sm:$0xff]
    %v22 = vld [vmem:[%s0 + $0x8] sm:$0xff]
    %v23 = vld [vmem:[%s1] sm:$0xff]
    %v24 = vld [vmem:[%s1 + $0x8] sm:$0xff]
    %v25 = vld [vmem:[%s1 + $0x10] sm:$0xff]
    %v26 = vld [vmem:[%s1 + $0x18] sm:$0xff]
    %v27 = vld [vmem:[%s1 + $0x20] sm:$0xff]
    %v28 = vld [vmem:[%s1 + $0x28] sm:$0xff]
    %v29 = vld [vmem:[%s1 + $0x30] sm:$0xff]
    %v30 = vld [vmem:[%s1 + $0x38] sm:$0xff]
    %v31 = vld [vmem:[%s1 + $0x40] sm:$0xff]
    %v32 = vld [vmem:[%s1 + $0x48] sm:$0xff]
    %v33 = vld [vmem:[%s1 + $0x50] sm:$0xff]
    %v34 = vld [vmem:[%s1 + $0x58] sm:$0xff]
    %v35 = vld [vmem:[%s1 + $0x60] sm:$0xff]
    %v36 = vld [vmem:[%s1 + $0x68] sm:$0xff]
    %v37 = vld [vmem:[%s1 + $0x70] sm:$0xff]
    %v38 = vld [vmem:[%s1 + $0x78] sm:$0xff]
    %vm39 = vcmask 523264
    %v41 = vsel %vm39, %v21, 0
    %v44 = vsel %vm39, %v22, 0
    %46 = vmatpush.msra.mxu0 0.0
    %47 = vmatpush.msra.mxu0 0.0
    %48 = vmatpush.msra.mxu0 0.0
    %49 = vmatpush.msra.mxu0 0.0
    %50 = vmatpush.msra.mxu0 0.0
    %51 = vmatpush.msra.mxu0 0.0
    %52 = vmatpush.msra.mxu0 0.0
    %53 = vmatpush.msra.mxu0 0.0
    %54 = vmatpush.msra.mxu0 %v37
    %55 = vmatpush.msra.mxu0 %v35
    %56 = vmatpush.msra.mxu0 %v33
    %57 = vmatpush.msra.mxu0 %v31
    %58 = vmatpush.msra.mxu0 %v29
    %59 = vmatpush.msra.mxu0 %v27
    %60 = vmatpush.msra.mxu0 %v25
    %61 = vmatpush.msra.mxu0 %v23
    %62 = vmatmul.f32.gmra.mxu0 %v41
    %v63 = vpop.f32.mrf.mxu0
    %v64 = vadd.f32 0.0, %v63
    %65 = vmatmul.f32.gmra.mxu0 %v44
    %v66 = vpop.f32.mrf.mxu0
    %v67 = vadd.f32 0.0, %v66
    %68 = vdwg.mxu0
    %69 = vmatpush.msra.mxu0 0.0
    %70 = vmatpush.msra.mxu0 0.0
    %71 = vmatpush.msra.mxu0 0.0
    %72 = vmatpush.msra.mxu0 0.0
    %73 = vmatpush.msra.mxu0 0.0
    %74 = vmatpush.msra.mxu0 0.0
    %75 = vmatpush.msra.mxu0 0.0
    %76 = vmatpush.msra.mxu0 0.0
    %77 = vmatpush.msra.mxu0 %v38
    %78 = vmatpush.msra.mxu0 %v36
    %79 = vmatpush.msra.mxu0 %v34
    %80 = vmatpush.msra.mxu0 %v32
    %81 = vmatpush.msra.mxu0 %v30
    %82 = vmatpush.msra.mxu0 %v28
    %83 = vmatpush.msra.mxu0 %v26
    %84 = vmatpush.msra.mxu0 %v24
    %85 = vmatmul.f32.gmra.mxu0 %v41
    %v86 = vpop.f32.mrf.mxu0
    %v87 = vadd.f32 0.0, %v86
    %88 = vmatmul.f32.gmra.mxu0 %v44
    %v89 = vpop.f32.mrf.mxu0
    %v90 = vadd.f32 0.0, %v89
    %91 = vdwg.mxu0
    %93 = vrot.lane.b32.xlu0 %v64, 64
    %v94 = vpop.permute.xlu0 %93
    %vm95 = vcmask 64512
    %v96 = vsel %vm95, %v64, 0
    %v98 = vsel %vm95, %v94, 0
    %100 = vmatpush.xpose.msra.mxu0 0.0
    %101 = vmatpush.xpose.msra.mxu0 0.0
    %102 = vmatpush.xpose.msra.mxu0 0.0
    %103 = vmatpush.xpose.msra.mxu0 0.0
    %104 = vmatpush.xpose.msra.mxu0 0.0
    %105 = vmatpush.xpose.msra.mxu0 0.0
    %106 = vmatpush.xpose.msra.mxu0 0.0
    %107 = vmatpush.xpose.msra.mxu0 0.0
    %108 = vmatpush.xpose.msra.mxu0 0.0
    %109 = vmatpush.xpose.msra.mxu0 0.0
    %110 = vmatpush.xpose.msra.mxu0 0.0
    %111 = vmatpush.xpose.msra.mxu0 0.0
    %112 = vmatpush.xpose.msra.mxu0 0.0
    %113 = vmatpush.xpose.msra.mxu0 0.0
    %114 = vmatpush.xpose.msra.mxu0 0.0
    %115 = vmatpush.xpose.msra.mxu0 %v98
    %116 = vmatmul.f32.gmra.mxu0 %v96
    %v117 = vpop.f32.mrf.mxu0
    %v118 = vadd.f32 0.0, %v117
    %119 = vdwg.mxu0
    %120 = vst.msk [vmem:[#allocation2] sm:$0xff] %vm95, %v118
    %121 = vrot.lane.b32.xlu0 %v64, 120
    %v122 = vpop.permute.xlu0 %121
    %123 = vrot.lane.b32.xlu0 %v64, 56
    %v124 = vpop.permute.xlu0 %123
    %v125 = vsel %vm95, %v122, 0
    %v127 = vsel %vm95, %v124, 0
    %129 = vmatpush.xpose.msra.mxu0 0.0
    %130 = vmatpush.xpose.msra.mxu0 0.0
    %131 = vmatpush.xpose.msra.mxu0 0.0
    %132 = vmatpush.xpose.msra.mxu0 0.0
    %133 = vmatpush.xpose.msra.mxu0 0.0
    %134 = vmatpush.xpose.msra.mxu0 0.0
    %135 = vmatpush.xpose.msra.mxu0 0.0
    %136 = vmatpush.xpose.msra.mxu0 0.0
    %137 = vmatpush.xpose.msra.mxu0 0.0
    %138 = vmatpush.xpose.msra.mxu0 0.0
    %139 = vmatpush.xpose.msra.mxu0 0.0
    %140 = vmatpush.xpose.msra.mxu0 0.0
    %141 = vmatpush.xpose.msra.mxu0 0.0
    %142 = vmatpush.xpose.msra.mxu0 0.0
    %143 = vmatpush.xpose.msra.mxu0 0.0
    %144 = vmatpush.xpose.msra.mxu0 %v127
    %145 = vmatmul.f32.gmra.mxu0 %v125
    %v146 = vpop.f32.mrf.mxu0
    %v147 = vadd.f32 0.0, %v146
    %148 = vdwg.mxu0
    %149 = vst.msk [vmem:[#allocation2 + $0x8] sm:$0xff] %vm95, %v147
    %150 = vrot.lane.b32.xlu0 %v64, 112
    %v151 = vpop.permute.xlu0 %150
    %152 = vrot.lane.b32.xlu0 %v64, 48
    %v153 = vpop.permute.xlu0 %152
    %v154 = vsel %vm95, %v151, 0
    %v156 = vsel %vm95, %v153, 0
    %158 = vmatpush.xpose.msra.mxu0 0.0
    %159 = vmatpush.xpose.msra.mxu0 0.0
    %160 = vmatpush.xpose.msra.mxu0 0.0
    %161 = vmatpush.xpose.msra.mxu0 0.0
    %162 = vmatpush.xpose.msra.mxu0 0.0
    %163 = vmatpush.xpose.msra.mxu0 0.0
    %164 = vmatpush.xpose.msra.mxu0 0.0
    %165 = vmatpush.xpose.msra.mxu0 0.0
    %166 = vmatpush.xpose.msra.mxu0 0.0
    %167 = vmatpush.xpose.msra.mxu0 0.0
    %168 = vmatpush.xpose.msra.mxu0 0.0
    %169 = vmatpush.xpose.msra.mxu0 0.0
    %170 = vmatpush.xpose.msra.mxu0 0.0
    %171 = vmatpush.xpose.msra.mxu0 0.0
    %172 = vmatpush.xpose.msra.mxu0 0.0
    %173 = vmatpush.xpose.msra.mxu0 %v156
    %174 = vmatmul.f32.gmra.mxu0 %v154
    %v175 = vpop.f32.mrf.mxu0
    %v176 = vadd.f32 0.0, %v175
    %177 = vdwg.mxu0
    %178 = vst.msk [vmem:[#allocation2 + $0x10] sm:$0xff] %vm95, %v176
    %179 = vrot.lane.b32.xlu0 %v64, 104
    %v180 = vpop.permute.xlu0 %179
    %181 = vrot.lane.b32.xlu0 %v64, 40
    %v182 = vpop.permute.xlu0 %181
    %v183 = vsel %vm95, %v180, 0
    %v185 = vsel %vm95, %v182, 0
    %187 = vmatpush.xpose.msra.mxu0 0.0
    %188 = vmatpush.xpose.msra.mxu0 0.0
    %189 = vmatpush.xpose.msra.mxu0 0.0
    %190 = vmatpush.xpose.msra.mxu0 0.0
    %191 = vmatpush.xpose.msra.mxu0 0.0
    %192 = vmatpush.xpose.msra.mxu0 0.0
    %193 = vmatpush.xpose.msra.mxu0 0.0
    %194 = vmatpush.xpose.msra.mxu0 0.0
    %195 = vmatpush.xpose.msra.mxu0 0.0
    %196 = vmatpush.xpose.msra.mxu0 0.0
    %197 = vmatpush.xpose.msra.mxu0 0.0
    %198 = vmatpush.xpose.msra.mxu0 0.0
    %199 = vmatpush.xpose.msra.mxu0 0.0
    %200 = vmatpush.xpose.msra.mxu0 0.0
    %201 = vmatpush.xpose.msra.mxu0 0.0
    %202 = vmatpush.xpose.msra.mxu0 %v185
    %203 = vmatmul.f32.gmra.mxu0 %v183
    %v204 = vpop.f32.mrf.mxu0
    %v205 = vadd.f32 0.0, %v204
    %206 = vdwg.mxu0
    %207 = vst.msk [vmem:[#allocation2 + $0x18] sm:$0xff] %vm95, %v205
    %208 = vrot.lane.b32.xlu0 %v64, 96
    %v209 = vpop.permute.xlu0 %208
    %210 = vrot.lane.b32.xlu0 %v64, 32
    %v211 = vpop.permute.xlu0 %210
    %v212 = vsel %vm95, %v209, 0
    %v214 = vsel %vm95, %v211, 0
    %216 = vmatpush.xpose.msra.mxu0 0.0
    %217 = vmatpush.xpose.msra.mxu0 0.0
    %218 = vmatpush.xpose.msra.mxu0 0.0
    %219 = vmatpush.xpose.msra.mxu0 0.0
    %220 = vmatpush.xpose.msra.mxu0 0.0
    %221 = vmatpush.xpose.msra.mxu0 0.0
    %222 = vmatpush.xpose.msra.mxu0 0.0
    %223 = vmatpush.xpose.msra.mxu0 0.0
    %224 = vmatpush.xpose.msra.mxu0 0.0
    %225 = vmatpush.xpose.msra.mxu0 0.0
    %226 = vmatpush.xpose.msra.mxu0 0.0
    %227 = vmatpush.xpose.msra.mxu0 0.0
    %228 = vmatpush.xpose.msra.mxu0 0.0
    %229 = vmatpush.xpose.msra.mxu0 0.0
    %230 = vmatpush.xpose.msra.mxu0 0.0
    %231 = vmatpush.xpose.msra.mxu0 %v214
    %232 = vmatmul.f32.gmra.mxu0 %v212
    %v233 = vpop.f32.mrf.mxu0
    %v234 = vadd.f32 0.0, %v233
    %235 = vdwg.mxu0
    %236 = vst.msk [vmem:[#allocation2 + $0x20] sm:$0xff] %vm95, %v234
    %237 = vrot.lane.b32.xlu0 %v64, 88
    %v238 = vpop.permute.xlu0 %237
    %239 = vrot.lane.b32.xlu0 %v64, 24
    %v240 = vpop.permute.xlu0 %239
    %v241 = vsel %vm95, %v238, 0
    %v243 = vsel %vm95, %v240, 0
    %245 = vmatpush.xpose.msra.mxu0 0.0
    %246 = vmatpush.xpose.msra.mxu0 0.0
    %247 = vmatpush.xpose.msra.mxu0 0.0
    %248 = vmatpush.xpose.msra.mxu0 0.0
    %249 = vmatpush.xpose.msra.mxu0 0.0
    %250 = vmatpush.xpose.msra.mxu0 0.0
    %251 = vmatpush.xpose.msra.mxu0 0.0
    %252 = vmatpush.xpose.msra.mxu0 0.0
    %253 = vmatpush.xpose.msra.mxu0 0.0
    %254 = vmatpush.xpose.msra.mxu0 0.0
    %255 = vmatpush.xpose.msra.mxu0 0.0
    %256 = vmatpush.xpose.msra.mxu0 0.0
    %257 = vmatpush.xpose.msra.mxu0 0.0
    %258 = vmatpush.xpose.msra.mxu0 0.0
    %259 = vmatpush.xpose.msra.mxu0 0.0
    %260 = vmatpush.xpose.msra.mxu0 %v243
    %261 = vmatmul.f32.gmra.mxu0 %v241
    %v262 = vpop.f32.mrf.mxu0
    %v263 = vadd.f32 0.0, %v262
    %264 = vdwg.mxu0
    %265 = vst.msk [vmem:[#allocation2 + $0x28] sm:$0xff] %vm95, %v263
    %266 = vrot.lane.b32.xlu0 %v64, 80
    %v267 = vpop.permute.xlu0 %266
    %268 = vrot.lane.b32.xlu0 %v64, 16
    %v269 = vpop.permute.xlu0 %268
    %v270 = vsel %vm95, %v267, 0
    %v272 = vsel %vm95, %v269, 0
    %274 = vmatpush.xpose.msra.mxu0 0.0
    %275 = vmatpush.xpose.msra.mxu0 0.0
    %276 = vmatpush.xpose.msra.mxu0 0.0
    %277 = vmatpush.xpose.msra.mxu0 0.0
    %278 = vmatpush.xpose.msra.mxu0 0.0
    %279 = vmatpush.xpose.msra.mxu0 0.0
    %280 = vmatpush.xpose.msra.mxu0 0.0
    %281 = vmatpush.xpose.msra.mxu0 0.0
    %282 = vmatpush.xpose.msra.mxu0 0.0
    %283 = vmatpush.xpose.msra.mxu0 0.0
    %284 = vmatpush.xpose.msra.mxu0 0.0
    %285 = vmatpush.xpose.msra.mxu0 0.0
    %286 = vmatpush.xpose.msra.mxu0 0.0
    %287 = vmatpush.xpose.msra.mxu0 0.0
    %288 = vmatpush.xpose.msra.mxu0 0.0
    %289 = vmatpush.xpose.msra.mxu0 %v272
    %290 = vmatmul.f32.gmra.mxu0 %v270
    %v291 = vpop.f32.mrf.mxu0
    %v292 = vadd.f32 0.0, %v291
    %293 = vdwg.mxu0
    %294 = vst.msk [vmem:[#allocation2 + $0x30] sm:$0xff] %vm95, %v292
    %295 = vrot.lane.b32.xlu0 %v64, 72
    %v296 = vpop.permute.xlu0 %295
    %297 = vrot.lane.b32.xlu0 %v64, 8
    %v298 = vpop.permute.xlu0 %297
    %v299 = vsel %vm95, %v296, 0
    %v301 = vsel %vm95, %v298, 0
    %303 = vmatpush.xpose.msra.mxu0 0.0
    %304 = vmatpush.xpose.msra.mxu0 0.0
    %305 = vmatpush.xpose.msra.mxu0 0.0
    %306 = vmatpush.xpose.msra.mxu0 0.0
    %307 = vmatpush.xpose.msra.mxu0 0.0
    %308 = vmatpush.xpose.msra.mxu0 0.0
    %309 = vmatpush.xpose.msra.mxu0 0.0
    %310 = vmatpush.xpose.msra.mxu0 0.0
    %311 = vmatpush.xpose.msra.mxu0 0.0
    %312 = vmatpush.xpose.msra.mxu0 0.0
    %313 = vmatpush.xpose.msra.mxu0 0.0
    %314 = vmatpush.xpose.msra.mxu0 0.0
    %315 = vmatpush.xpose.msra.mxu0 0.0
    %316 = vmatpush.xpose.msra.mxu0 0.0
    %317 = vmatpush.xpose.msra.mxu0 0.0
    %318 = vmatpush.xpose.msra.mxu0 %v301
    %319 = vmatmul.f32.gmra.mxu0 %v299
    %v320 = vpop.f32.mrf.mxu0
    %v321 = vadd.f32 0.0, %v320
    %322 = vdwg.mxu0
    %323 = vst.msk [vmem:[#allocation2 + $0x38] sm:$0xff] %vm95, %v321
    %325 = vrot.lane.b32.xlu0 %v67, 64
    %v326 = vpop.permute.xlu0 %325
    %v327 = vsel %vm95, %v67, 0
    %v329 = vsel %vm95, %v326, 0
    %331 = vmatpush.xpose.msra.mxu0 0.0
    %332 = vmatpush.xpose.msra.mxu0 0.0
    %333 = vmatpush.xpose.msra.mxu0 0.0
    %334 = vmatpush.xpose.msra.mxu0 0.0
    %335 = vmatpush.xpose.msra.mxu0 0.0
    %336 = vmatpush.xpose.msra.mxu0 0.0
    %337 = vmatpush.xpose.msra.mxu0 0.0
    %338 = vmatpush.xpose.msra.mxu0 0.0
    %339 = vmatpush.xpose.msra.mxu0 0.0
    %340 = vmatpush.xpose.msra.mxu0 0.0
    %341 = vmatpush.xpose.msra.mxu0 0.0
    %342 = vmatpush.xpose.msra.mxu0 0.0
    %343 = vmatpush.xpose.msra.mxu0 0.0
    %344 = vmatpush.xpose.msra.mxu0 0.0
    %345 = vmatpush.xpose.msra.mxu0 0.0
    %346 = vmatpush.xpose.msra.mxu0 %v329
    %347 = vmatmul.f32.gmra.mxu0 %v327
    %v348 = vpop.f32.mrf.mxu0
    %v349 = vadd.f32 0.0, %v348
    %350 = vdwg.mxu0
    %s351 = scalar_lea.vmem [#allocation2], 64
    %352 = vst.msk [vmem:[%s351] sm:$0xff] %vm95, %v349
    %353 = vrot.lane.b32.xlu0 %v67, 120
    %v354 = vpop.permute.xlu0 %353
    %355 = vrot.lane.b32.xlu0 %v67, 56
    %v356 = vpop.permute.xlu0 %355
    %v357 = vsel %vm95, %v354, 0
    %v359 = vsel %vm95, %v356, 0
    %361 = vmatpush.xpose.msra.mxu0 0.0
    %362 = vmatpush.xpose.msra.mxu0 0.0
    %363 = vmatpush.xpose.msra.mxu0 0.0
    %364 = vmatpush.xpose.msra.mxu0 0.0
    %365 = vmatpush.xpose.msra.mxu0 0.0
    %366 = vmatpush.xpose.msra.mxu0 0.0
    %367 = vmatpush.xpose.msra.mxu0 0.0
    %368 = vmatpush.xpose.msra.mxu0 0.0
    %369 = vmatpush.xpose.msra.mxu0 0.0
    %370 = vmatpush.xpose.msra.mxu0 0.0
    %371 = vmatpush.xpose.msra.mxu0 0.0
    %372 = vmatpush.xpose.msra.mxu0 0.0
    %373 = vmatpush.xpose.msra.mxu0 0.0
    %374 = vmatpush.xpose.msra.mxu0 0.0
    %375 = vmatpush.xpose.msra.mxu0 0.0
    %376 = vmatpush.xpose.msra.mxu0 %v359
    %377 = vmatmul.f32.gmra.mxu0 %v357
    %v378 = vpop.f32.mrf.mxu0
    %v379 = vadd.f32 0.0, %v378
    %380 = vdwg.mxu0
    %381 = vst.msk [vmem:[%s351 + $0x8] sm:$0xff] %vm95, %v379
    %382 = vrot.lane.b32.xlu0 %v67, 112
    %v383 = vpop.permute.xlu0 %382
    %384 = vrot.lane.b32.xlu0 %v67, 48
    %v385 = vpop.permute.xlu0 %384
    %v386 = vsel %vm95, %v383, 0
    %v388 = vsel %vm95, %v385, 0
    %390 = vmatpush.xpose.msra.mxu0 0.0
    %391 = vmatpush.xpose.msra.mxu0 0.0
    %392 = vmatpush.xpose.msra.mxu0 0.0
    %393 = vmatpush.xpose.msra.mxu0 0.0
    %394 = vmatpush.xpose.msra.mxu0 0.0
    %395 = vmatpush.xpose.msra.mxu0 0.0
    %396 = vmatpush.xpose.msra.mxu0 0.0
    %397 = vmatpush.xpose.msra.mxu0 0.0
    %398 = vmatpush.xpose.msra.mxu0 0.0
    %399 = vmatpush.xpose.msra.mxu0 0.0
    %400 = vmatpush.xpose.msra.mxu0 0.0
    %401 = vmatpush.xpose.msra.mxu0 0.0
    %402 = vmatpush.xpose.msra.mxu0 0.0
    %403 = vmatpush.xpose.msra.mxu0 0.0
    %404 = vmatpush.xpose.msra.mxu0 0.0
    %405 = vmatpush.xpose.msra.mxu0 %v388
    %406 = vmatmul.f32.gmra.mxu0 %v386
    %v407 = vpop.f32.mrf.mxu0
    %v408 = vadd.f32 0.0, %v407
    %409 = vdwg.mxu0
    %410 = vst.msk [vmem:[%s351 + $0x10] sm:$0xff] %vm95, %v408
    %411 = vrot.lane.b32.xlu0 %v67, 104
    %v412 = vpop.permute.xlu0 %411
    %413 = vrot.lane.b32.xlu0 %v67, 40
    %v414 = vpop.permute.xlu0 %413
    %v415 = vsel %vm95, %v412, 0
    %v417 = vsel %vm95, %v414, 0
    %419 = vmatpush.xpose.msra.mxu0 0.0
    %420 = vmatpush.xpose.msra.mxu0 0.0
    %421 = vmatpush.xpose.msra.mxu0 0.0
    %422 = vmatpush.xpose.msra.mxu0 0.0
    %423 = vmatpush.xpose.msra.mxu0 0.0
    %424 = vmatpush.xpose.msra.mxu0 0.0
    %425 = vmatpush.xpose.msra.mxu0 0.0
    %426 = vmatpush.xpose.msra.mxu0 0.0
    %427 = vmatpush.xpose.msra.mxu0 0.0
    %428 = vmatpush.xpose.msra.mxu0 0.0
    %429 = vmatpush.xpose.msra.mxu0 0.0
    %430 = vmatpush.xpose.msra.mxu0 0.0
    %431 = vmatpush.xpose.msra.mxu0 0.0
    %432 = vmatpush.xpose.msra.mxu0 0.0
    %433 = vmatpush.xpose.msra.mxu0 0.0
    %434 = vmatpush.xpose.msra.mxu0 %v417
    %435 = vmatmul.f32.gmra.mxu0 %v415
    %v436 = vpop.f32.mrf.mxu0
    %v437 = vadd.f32 0.0, %v436
    %438 = vdwg.mxu0
    %439 = vst.msk [vmem:[%s351 + $0x18] sm:$0xff] %vm95, %v437
    %440 = vrot.lane.b32.xlu0 %v67, 96
    %v441 = vpop.permute.xlu0 %440
    %442 = vrot.lane.b32.xlu0 %v67, 32
    %v443 = vpop.permute.xlu0 %442
    %v444 = vsel %vm95, %v441, 0
    %v446 = vsel %vm95, %v443, 0
    %448 = vmatpush.xpose.msra.mxu0 0.0
    %449 = vmatpush.xpose.msra.mxu0 0.0
    %450 = vmatpush.xpose.msra.mxu0 0.0
    %451 = vmatpush.xpose.msra.mxu0 0.0
    %452 = vmatpush.xpose.msra.mxu0 0.0
    %453 = vmatpush.xpose.msra.mxu0 0.0
    %454 = vmatpush.xpose.msra.mxu0 0.0
    %455 = vmatpush.xpose.msra.mxu0 0.0
    %456 = vmatpush.xpose.msra.mxu0 0.0
    %457 = vmatpush.xpose.msra.mxu0 0.0
    %458 = vmatpush.xpose.msra.mxu0 0.0
    %459 = vmatpush.xpose.msra.mxu0 0.0
    %460 = vmatpush.xpose.msra.mxu0 0.0
    %461 = vmatpush.xpose.msra.mxu0 0.0
    %462 = vmatpush.xpose.msra.mxu0 0.0
    %463 = vmatpush.xpose.msra.mxu0 %v446
    %464 = vmatmul.f32.gmra.mxu0 %v444
    %v465 = vpop.f32.mrf.mxu0
    %v466 = vadd.f32 0.0, %v465
    %467 = vdwg.mxu0
    %468 = vst.msk [vmem:[%s351 + $0x20] sm:$0xff] %vm95, %v466
    %469 = vrot.lane.b32.xlu0 %v67, 88
    %v470 = vpop.permute.xlu0 %469
    %471 = vrot.lane.b32.xlu0 %v67, 24
    %v472 = vpop.permute.xlu0 %471
    %v473 = vsel %vm95, %v470, 0
    %v475 = vsel %vm95, %v472, 0
    %477 = vmatpush.xpose.msra.mxu0 0.0
    %478 = vmatpush.xpose.msra.mxu0 0.0
    %479 = vmatpush.xpose.msra.mxu0 0.0
    %480 = vmatpush.xpose.msra.mxu0 0.0
    %481 = vmatpush.xpose.msra.mxu0 0.0
    %482 = vmatpush.xpose.msra.mxu0 0.0
    %483 = vmatpush.xpose.msra.mxu0 0.0
    %484 = vmatpush.xpose.msra.mxu0 0.0
    %485 = vmatpush.xpose.msra.mxu0 0.0
    %486 = vmatpush.xpose.msra.mxu0 0.0
    %487 = vmatpush.xpose.msra.mxu0 0.0
    %488 = vmatpush.xpose.msra.mxu0 0.0
    %489 = vmatpush.xpose.msra.mxu0 0.0
    %490 = vmatpush.xpose.msra.mxu0 0.0
    %491 = vmatpush.xpose.msra.mxu0 0.0
    %492 = vmatpush.xpose.msra.mxu0 %v475
    %493 = vmatmul.f32.gmra.mxu0 %v473
    %v494 = vpop.f32.mrf.mxu0
    %v495 = vadd.f32 0.0, %v494
    %496 = vdwg.mxu0
    %497 = vst.msk [vmem:[%s351 + $0x28] sm:$0xff] %vm95, %v495
    %498 = vrot.lane.b32.xlu0 %v67, 80
    %v499 = vpop.permute.xlu0 %498
    %500 = vrot.lane.b32.xlu0 %v67, 16
    %v501 = vpop.permute.xlu0 %500
    %v502 = vsel %vm95, %v499, 0
    %v504 = vsel %vm95, %v501, 0
    %506 = vmatpush.xpose.msra.mxu0 0.0
    %507 = vmatpush.xpose.msra.mxu0 0.0
    %508 = vmatpush.xpose.msra.mxu0 0.0
    %509 = vmatpush.xpose.msra.mxu0 0.0
    %510 = vmatpush.xpose.msra.mxu0 0.0
    %511 = vmatpush.xpose.msra.mxu0 0.0
    %512 = vmatpush.xpose.msra.mxu0 0.0
    %513 = vmatpush.xpose.msra.mxu0 0.0
    %514 = vmatpush.xpose.msra.mxu0 0.0
    %515 = vmatpush.xpose.msra.mxu0 0.0
    %516 = vmatpush.xpose.msra.mxu0 0.0
    %517 = vmatpush.xpose.msra.mxu0 0.0
    %518 = vmatpush.xpose.msra.mxu0 0.0
    %519 = vmatpush.xpose.msra.mxu0 0.0
    %520 = vmatpush.xpose.msra.mxu0 0.0
    %521 = vmatpush.xpose.msra.mxu0 %v504
    %522 = vmatmul.f32.gmra.mxu0 %v502
    %v523 = vpop.f32.mrf.mxu0
    %v524 = vadd.f32 0.0, %v523
    %525 = vdwg.mxu0
    %526 = vst.msk [vmem:[%s351 + $0x30] sm:$0xff] %vm95, %v524
    %527 = vrot.lane.b32.xlu0 %v67, 72
    %v528 = vpop.permute.xlu0 %527
    %529 = vrot.lane.b32.xlu0 %v67, 8
    %v530 = vpop.permute.xlu0 %529
    %v531 = vsel %vm95, %v528, 0
    %v533 = vsel %vm95, %v530, 0
    %535 = vmatpush.xpose.msra.mxu0 0.0
    %536 = vmatpush.xpose.msra.mxu0 0.0
    %537 = vmatpush.xpose.msra.mxu0 0.0
    %538 = vmatpush.xpose.msra.mxu0 0.0
    %539 = vmatpush.xpose.msra.mxu0 0.0
    %540 = vmatpush.xpose.msra.mxu0 0.0
    %541 = vmatpush.xpose.msra.mxu0 0.0
    %542 = vmatpush.xpose.msra.mxu0 0.0
    %543 = vmatpush.xpose.msra.mxu0 0.0
    %544 = vmatpush.xpose.msra.mxu0 0.0
    %545 = vmatpush.xpose.msra.mxu0 0.0
    %546 = vmatpush.xpose.msra.mxu0 0.0
    %547 = vmatpush.xpose.msra.mxu0 0.0
    %548 = vmatpush.xpose.msra.mxu0 0.0
    %549 = vmatpush.xpose.msra.mxu0 0.0
    %550 = vmatpush.xpose.msra.mxu0 %v533
    %551 = vmatmul.f32.gmra.mxu0 %v531
    %v552 = vpop.f32.mrf.mxu0
    %v553 = vadd.f32 0.0, %v552
    %554 = vdwg.mxu0
    %555 = vst.msk [vmem:[%s351 + $0x38] sm:$0xff] %vm95, %v553
    %v556 = vld [vmem:[#allocation2] sm:$0xff]
    %v557 = vld [vmem:[#allocation2 + $0x8] sm:$0xff]
    %v558 = vld [vmem:[#allocation2 + $0x10] sm:$0xff]
    %v559 = vld [vmem:[#allocation2 + $0x18] sm:$0xff]
    %v560 = vld [vmem:[#allocation2 + $0x20] sm:$0xff]
    %v561 = vld [vmem:[#allocation2 + $0x28] sm:$0xff]
    %v562 = vld [vmem:[#allocation2 + $0x30] sm:$0xff]
    %v563 = vld [vmem:[#allocation2 + $0x38] sm:$0xff]
    %v564 = vld [vmem:[#allocation2 + $0x40] sm:$0xff]
    %v565 = vld [vmem:[#allocation2 + $0x48] sm:$0xff]
    %v566 = vld [vmem:[#allocation2 + $0x50] sm:$0xff]
    %v567 = vld [vmem:[#allocation2 + $0x58] sm:$0xff]
    %v568 = vld [vmem:[#allocation2 + $0x60] sm:$0xff]
    %v569 = vld [vmem:[#allocation2 + $0x68] sm:$0xff]
    %v570 = vld [vmem:[#allocation2 + $0x70] sm:$0xff]
    %v571 = vld [vmem:[#allocation2 + $0x78] sm:$0xff]
    %v572 = vld [vmem:[%s4] sm:$0x1]
    %v573 = vld [vmem:[%s4 + $0x1] sm:$0x1]
    %v576 = vperm.slane %v572, 0
    %v577 = vperm.slane %v573, 0
    %v580 = vadd.f32 %v556, %v576
    %v581 = vadd.f32 %v557, %v576
    %v582 = vadd.f32 %v558, %v576
    %v583 = vadd.f32 %v559, %v576
    %v584 = vadd.f32 %v560, %v576
    %v585 = vadd.f32 %v561, %v576
    %v586 = vadd.f32 %v562, %v576
    %v587 = vadd.f32 %v563, %v576
    %v588 = vadd.f32 %v564, %v577
    %v589 = vadd.f32 %v565, %v577
    %v590 = vadd.f32 %v566, %v577
    %v591 = vadd.f32 %v567, %v577
    %v592 = vadd.f32 %v568, %v577
    %v593 = vadd.f32 %v569, %v577
    %v594 = vadd.f32 %v570, %v577
    %v595 = vadd.f32 %v571, %v577
    %v596 = vsel %vm95, %v580, -inf
    %597 = vmax.xlane.f32.xlu0 %v596
    %v598 = vpop.xlane.xlu0 %597
    %v599 = vsel %vm95, %v581, -inf
    %600 = vmax.xlane.f32.xlu0 %v599
    %v601 = vpop.xlane.xlu0 %600
    %v602 = vsel %vm95, %v582, -inf
    %603 = vmax.xlane.f32.xlu0 %v602
    %v604 = vpop.xlane.xlu0 %603
    %v605 = vsel %vm95, %v583, -inf
    %606 = vmax.xlane.f32.xlu0 %v605
    %v607 = vpop.xlane.xlu0 %606
    %v608 = vsel %vm95, %v584, -inf
    %609 = vmax.xlane.f32.xlu0 %v608
    %v610 = vpop.xlane.xlu0 %609
    %v611 = vsel %vm95, %v585, -inf
    %612 = vmax.xlane.f32.xlu0 %v611
    %v613 = vpop.xlane.xlu0 %612
    %v614 = vsel %vm95, %v586, -inf
    %615 = vmax.xlane.f32.xlu0 %v614
    %v616 = vpop.xlane.xlu0 %615
    %v617 = vsel %vm95, %v587, -inf
    %618 = vmax.xlane.f32.xlu0 %v617
    %v619 = vpop.xlane.xlu0 %618
    %v620 = vsel %vm95, %v588, -inf
    %621 = vmax.xlane.f32.xlu0 %v620
    %v622 = vpop.xlane.xlu0 %621
    %v623 = vsel %vm95, %v589, -inf
    %624 = vmax.xlane.f32.xlu0 %v623
    %v625 = vpop.xlane.xlu0 %624
    %v626 = vsel %vm95, %v590, -inf
    %627 = vmax.xlane.f32.xlu0 %v626
    %v628 = vpop.xlane.xlu0 %627
    %v629 = vsel %vm95, %v591, -inf
    %630 = vmax.xlane.f32.xlu0 %v629
    %v631 = vpop.xlane.xlu0 %630
    %v632 = vsel %vm95, %v592, -inf
    %633 = vmax.xlane.f32.xlu0 %v632
    %v634 = vpop.xlane.xlu0 %633
    %v635 = vsel %vm95, %v593, -inf
    %636 = vmax.xlane.f32.xlu0 %v635
    %v637 = vpop.xlane.xlu0 %636
    %v638 = vsel %vm95, %v594, -inf
    %639 = vmax.xlane.f32.xlu0 %v638
    %v640 = vpop.xlane.xlu0 %639
    %v641 = vsel %vm95, %v595, -inf
    %642 = vmax.xlane.f32.xlu0 %v641
    %v643 = vpop.xlane.xlu0 %642
    %v644 = vsub.f32 %v580, %v598
    %v645 = vsub.f32 %v581, %v601
    %v646 = vsub.f32 %v582, %v604
    %v647 = vsub.f32 %v583, %v607
    %v648 = vsub.f32 %v584, %v610
    %v649 = vsub.f32 %v585, %v613
    %v650 = vsub.f32 %v586, %v616
    %v651 = vsub.f32 %v587, %v619
    %v652 = vsub.f32 %v588, %v622
    %v653 = vsub.f32 %v589, %v625
    %v654 = vsub.f32 %v590, %v628
    %v655 = vsub.f32 %v591, %v631
    %v656 = vsub.f32 %v592, %v634
    %v657 = vsub.f32 %v593, %v637
    %v658 = vsub.f32 %v594, %v640
    %v659 = vsub.f32 %v595, %v643
    %v660 = vmul.f32 %v644, 1.442695
    %v661 = vpow.pop %v660
    %v662 = vmul.f32 %v645, 1.442695
    %v663 = vpow.pop %v662
    %v664 = vmul.f32 %v646, 1.442695
    %v665 = vpow.pop %v664
    %v666 = vmul.f32 %v647, 1.442695
    %v667 = vpow.pop %v666
    %v668 = vmul.f32 %v648, 1.442695
    %v669 = vpow.pop %v668
    %v670 = vmul.f32 %v649, 1.442695
    %v671 = vpow.pop %v670
    %v672 = vmul.f32 %v650, 1.442695
    %v673 = vpow.pop %v672
    %v674 = vmul.f32 %v651, 1.442695
    %v675 = vpow.pop %v674
    %v676 = vmul.f32 %v652, 1.442695
    %v677 = vpow.pop %v676
    %v678 = vmul.f32 %v653, 1.442695
    %v679 = vpow.pop %v678
    %v680 = vmul.f32 %v654, 1.442695
    %v681 = vpow.pop %v680
    %v682 = vmul.f32 %v655, 1.442695
    %v683 = vpow.pop %v682
    %v684 = vmul.f32 %v656, 1.442695
    %v685 = vpow.pop %v684
    %v686 = vmul.f32 %v657, 1.442695
    %v687 = vpow.pop %v686
    %v688 = vmul.f32 %v658, 1.442695
    %v689 = vpow.pop %v688
    %v690 = vmul.f32 %v659, 1.442695
    %v691 = vpow.pop %v690
    %v692 = vsel %vm95, %v661, 0.0
    %693 = vadd.xlane.f32.xlu0 %v692
    %v694 = vpop.xlane.xlu0 %693
    %v695 = vsel %vm95, %v663, 0.0
    %696 = vadd.xlane.f32.xlu0 %v695
    %v697 = vpop.xlane.xlu0 %696
    %v698 = vsel %vm95, %v665, 0.0
    %699 = vadd.xlane.f32.xlu0 %v698
    %v700 = vpop.xlane.xlu0 %699
    %v701 = vsel %vm95, %v667, 0.0
    %702 = vadd.xlane.f32.xlu0 %v701
    %v703 = vpop.xlane.xlu0 %702
    %v704 = vsel %vm95, %v669, 0.0
    %705 = vadd.xlane.f32.xlu0 %v704
    %v706 = vpop.xlane.xlu0 %705
    %v707 = vsel %vm95, %v671, 0.0
    %708 = vadd.xlane.f32.xlu0 %v707
    %v709 = vpop.xlane.xlu0 %708
    %v710 = vsel %vm95, %v673, 0.0
    %711 = vadd.xlane.f32.xlu0 %v710
    %v712 = vpop.xlane.xlu0 %711
    %v713 = vsel %vm95, %v675, 0.0
    %714 = vadd.xlane.f32.xlu0 %v713
    %v715 = vpop.xlane.xlu0 %714
    %v716 = vsel %vm95, %v677, 0.0
    %717 = vadd.xlane.f32.xlu0 %v716
    %v718 = vpop.xlane.xlu0 %717
    %v719 = vsel %vm95, %v679, 0.0
    %720 = vadd.xlane.f32.xlu0 %v719
    %v721 = vpop.xlane.xlu0 %720
    %v722 = vsel %vm95, %v681, 0.0
    %723 = vadd.xlane.f32.xlu0 %v722
    %v724 = vpop.xlane.xlu0 %723
    %v725 = vsel %vm95, %v683, 0.0
    %726 = vadd.xlane.f32.xlu0 %v725
    %v727 = vpop.xlane.xlu0 %726
    %v728 = vsel %vm95, %v685, 0.0
    %729 = vadd.xlane.f32.xlu0 %v728
    %v730 = vpop.xlane.xlu0 %729
    %v731 = vsel %vm95, %v687, 0.0
    %732 = vadd.xlane.f32.xlu0 %v731
    %v733 = vpop.xlane.xlu0 %732
    %v734 = vsel %vm95, %v689, 0.0
    %735 = vadd.xlane.f32.xlu0 %v734
    %v736 = vpop.xlane.xlu0 %735
    %v737 = vsel %vm95, %v691, 0.0
    %738 = vadd.xlane.f32.xlu0 %v737
    %v739 = vpop.xlane.xlu0 %738
    %v740 = vrcp.pop %v694
    %v741 = vmul.f32 %v694, %v740
    %v742 = vsub.f32 1.0, %v741
    %v743 = vmul.f32 %v740, %v742
    %v744 = vadd.f32 %v740, %v743
    %vm745 = vweird.f32 %v694
    %vm746 = vweird.f32 %v740
    %vm747 = vmor %vm745, %vm746
    %v748 = vsel %vm747, %v740, %v744
    %v749 = vand.u32 2147483647, %v694
    %vm750 = vcmp.eq.f32.partialorder %v749, 8.507059e+37
    %v751 = vand.u32 %v694, 2147483648
    %v752 = vor.u32 1.1754944e-38, %v751
    %v753 = vsel %vm750, %v752, %v748
    %v754 = vmul.f32 %v661, %v753
    %v755 = vrcp.pop %v697
    %v756 = vmul.f32 %v697, %v755
    %v757 = vsub.f32 1.0, %v756
    %v758 = vmul.f32 %v755, %v757
    %v759 = vadd.f32 %v755, %v758
    %vm760 = vweird.f32 %v697
    %vm761 = vweird.f32 %v755
    %vm762 = vmor %vm760, %vm761
    %v763 = vsel %vm762, %v755, %v759
    %v764 = vand.u32 2147483647, %v697
    %vm765 = vcmp.eq.f32.partialorder %v764, 8.507059e+37
    %v766 = vand.u32 %v697, 2147483648
    %v767 = vor.u32 1.1754944e-38, %v766
    %v768 = vsel %vm765, %v767, %v763
    %v769 = vmul.f32 %v663, %v768
    %v770 = vrcp.pop %v700
    %v771 = vmul.f32 %v700, %v770
    %v772 = vsub.f32 1.0, %v771
    %v773 = vmul.f32 %v770, %v772
    %v774 = vadd.f32 %v770, %v773
    %vm775 = vweird.f32 %v700
    %vm776 = vweird.f32 %v770
    %vm777 = vmor %vm775, %vm776
    %v778 = vsel %vm777, %v770, %v774
    %v779 = vand.u32 2147483647, %v700
    %vm780 = vcmp.eq.f32.partialorder %v779, 8.507059e+37
    %v781 = vand.u32 %v700, 2147483648
    %v782 = vor.u32 1.1754944e-38, %v781
    %v783 = vsel %vm780, %v782, %v778
    %v784 = vmul.f32 %v665, %v783
    %v785 = vrcp.pop %v703
    %v786 = vmul.f32 %v703, %v785
    %v787 = vsub.f32 1.0, %v786
    %v788 = vmul.f32 %v785, %v787
    %v789 = vadd.f32 %v785, %v788
    %vm790 = vweird.f32 %v703
    %vm791 = vweird.f32 %v785
    %vm792 = vmor %vm790, %vm791
    %v793 = vsel %vm792, %v785, %v789
    %v794 = vand.u32 2147483647, %v703
    %vm795 = vcmp.eq.f32.partialorder %v794, 8.507059e+37
    %v796 = vand.u32 %v703, 2147483648
    %v797 = vor.u32 1.1754944e-38, %v796
    %v798 = vsel %vm795, %v797, %v793
    %v799 = vmul.f32 %v667, %v798
    %v800 = vrcp.pop %v706
    %v801 = vmul.f32 %v706, %v800
    %v802 = vsub.f32 1.0, %v801
    %v803 = vmul.f32 %v800, %v802
    %v804 = vadd.f32 %v800, %v803
    %vm805 = vweird.f32 %v706
    %vm806 = vweird.f32 %v800
    %vm807 = vmor %vm805, %vm806
    %v808 = vsel %vm807, %v800, %v804
    %v809 = vand.u32 2147483647, %v706
    %vm810 = vcmp.eq.f32.partialorder %v809, 8.507059e+37
    %v811 = vand.u32 %v706, 2147483648
    %v812 = vor.u32 1.1754944e-38, %v811
    %v813 = vsel %vm810, %v812, %v808
    %v814 = vmul.f32 %v669, %v813
    %v815 = vrcp.pop %v709
    %v816 = vmul.f32 %v709, %v815
    %v817 = vsub.f32 1.0, %v816
    %v818 = vmul.f32 %v815, %v817
    %v819 = vadd.f32 %v815, %v818
    %vm820 = vweird.f32 %v709
    %vm821 = vweird.f32 %v815
    %vm822 = vmor %vm820, %vm821
    %v823 = vsel %vm822, %v815, %v819
    %v824 = vand.u32 2147483647, %v709
    %vm825 = vcmp.eq.f32.partialorder %v824, 8.507059e+37
    %v826 = vand.u32 %v709, 2147483648
    %v827 = vor.u32 1.1754944e-38, %v826
    %v828 = vsel %vm825, %v827, %v823
    %v829 = vmul.f32 %v671, %v828
    %v830 = vrcp.pop %v712
    %v831 = vmul.f32 %v712, %v830
    %v832 = vsub.f32 1.0, %v831
    %v833 = vmul.f32 %v830, %v832
    %v834 = vadd.f32 %v830, %v833
    %vm835 = vweird.f32 %v712
    %vm836 = vweird.f32 %v830
    %vm837 = vmor %vm835, %vm836
    %v838 = vsel %vm837, %v830, %v834
    %v839 = vand.u32 2147483647, %v712
    %vm840 = vcmp.eq.f32.partialorder %v839, 8.507059e+37
    %v841 = vand.u32 %v712, 2147483648
    %v842 = vor.u32 1.1754944e-38, %v841
    %v843 = vsel %vm840, %v842, %v838
    %v844 = vmul.f32 %v673, %v843
    %v845 = vrcp.pop %v715
    %v846 = vmul.f32 %v715, %v845
    %v847 = vsub.f32 1.0, %v846
    %v848 = vmul.f32 %v845, %v847
    %v849 = vadd.f32 %v845, %v848
    %vm850 = vweird.f32 %v715
    %vm851 = vweird.f32 %v845
    %vm852 = vmor %vm850, %vm851
    %v853 = vsel %vm852, %v845, %v849
    %v854 = vand.u32 2147483647, %v715
    %vm855 = vcmp.eq.f32.partialorder %v854, 8.507059e+37
    %v856 = vand.u32 %v715, 2147483648
    %v857 = vor.u32 1.1754944e-38, %v856
    %v858 = vsel %vm855, %v857, %v853
    %v859 = vmul.f32 %v675, %v858
    %v860 = vrcp.pop %v718
    %v861 = vmul.f32 %v718, %v860
    %v862 = vsub.f32 1.0, %v861
    %v863 = vmul.f32 %v860, %v862
    %v864 = vadd.f32 %v860, %v863
    %vm865 = vweird.f32 %v718
    %vm866 = vweird.f32 %v860
    %vm867 = vmor %vm865, %vm866
    %v868 = vsel %vm867, %v860, %v864
    %v869 = vand.u32 2147483647, %v718
    %vm870 = vcmp.eq.f32.partialorder %v869, 8.507059e+37
    %v871 = vand.u32 %v718, 2147483648
    %v872 = vor.u32 1.1754944e-38, %v871
    %v873 = vsel %vm870, %v872, %v868
    %v874 = vmul.f32 %v677, %v873
    %v875 = vrcp.pop %v721
    %v876 = vmul.f32 %v721, %v875
    %v877 = vsub.f32 1.0, %v876
    %v878 = vmul.f32 %v875, %v877
    %v879 = vadd.f32 %v875, %v878
    %vm880 = vweird.f32 %v721
    %vm881 = vweird.f32 %v875
    %vm882 = vmor %vm880, %vm881
    %v883 = vsel %vm882, %v875, %v879
    %v884 = vand.u32 2147483647, %v721
    %vm885 = vcmp.eq.f32.partialorder %v884, 8.507059e+37
    %v886 = vand.u32 %v721, 2147483648
    %v887 = vor.u32 1.1754944e-38, %v886
    %v888 = vsel %vm885, %v887, %v883
    %v889 = vmul.f32 %v679, %v888
    %v890 = vrcp.pop %v724
    %v891 = vmul.f32 %v724, %v890
    %v892 = vsub.f32 1.0, %v891
    %v893 = vmul.f32 %v890, %v892
    %v894 = vadd.f32 %v890, %v893
    %vm895 = vweird.f32 %v724
    %vm896 = vweird.f32 %v890
    %vm897 = vmor %vm895, %vm896
    %v898 = vsel %vm897, %v890, %v894
    %v899 = vand.u32 2147483647, %v724
    %vm900 = vcmp.eq.f32.partialorder %v899, 8.507059e+37
    %v901 = vand.u32 %v724, 2147483648
    %v902 = vor.u32 1.1754944e-38, %v901
    %v903 = vsel %vm900, %v902, %v898
    %v904 = vmul.f32 %v681, %v903
    %v905 = vrcp.pop %v727
    %v906 = vmul.f32 %v727, %v905
    %v907 = vsub.f32 1.0, %v906
    %v908 = vmul.f32 %v905, %v907
    %v909 = vadd.f32 %v905, %v908
    %vm910 = vweird.f32 %v727
    %vm911 = vweird.f32 %v905
    %vm912 = vmor %vm910, %vm911
    %v913 = vsel %vm912, %v905, %v909
    %v914 = vand.u32 2147483647, %v727
    %vm915 = vcmp.eq.f32.partialorder %v914, 8.507059e+37
    %v916 = vand.u32 %v727, 2147483648
    %v917 = vor.u32 1.1754944e-38, %v916
    %v918 = vsel %vm915, %v917, %v913
    %v919 = vmul.f32 %v683, %v918
    %v920 = vrcp.pop %v730
    %v921 = vmul.f32 %v730, %v920
    %v922 = vsub.f32 1.0, %v921
    %v923 = vmul.f32 %v920, %v922
    %v924 = vadd.f32 %v920, %v923
    %vm925 = vweird.f32 %v730
    %vm926 = vweird.f32 %v920
    %vm927 = vmor %vm925, %vm926
    %v928 = vsel %vm927, %v920, %v924
    %v929 = vand.u32 2147483647, %v730
    %vm930 = vcmp.eq.f32.partialorder %v929, 8.507059e+37
    %v931 = vand.u32 %v730, 2147483648
    %v932 = vor.u32 1.1754944e-38, %v931
    %v933 = vsel %vm930, %v932, %v928
    %v934 = vmul.f32 %v685, %v933
    %v935 = vrcp.pop %v733
    %v936 = vmul.f32 %v733, %v935
    %v937 = vsub.f32 1.0, %v936
    %v938 = vmul.f32 %v935, %v937
    %v939 = vadd.f32 %v935, %v938
    %vm940 = vweird.f32 %v733
    %vm941 = vweird.f32 %v935
    %vm942 = vmor %vm940, %vm941
    %v943 = vsel %vm942, %v935, %v939
    %v944 = vand.u32 2147483647, %v733
    %vm945 = vcmp.eq.f32.partialorder %v944, 8.507059e+37
    %v946 = vand.u32 %v733, 2147483648
    %v947 = vor.u32 1.1754944e-38, %v946
    %v948 = vsel %vm945, %v947, %v943
    %v949 = vmul.f32 %v687, %v948
    %v950 = vrcp.pop %v736
    %v951 = vmul.f32 %v736, %v950
    %v952 = vsub.f32 1.0, %v951
    %v953 = vmul.f32 %v950, %v952
    %v954 = vadd.f32 %v950, %v953
    %vm955 = vweird.f32 %v736
    %vm956 = vweird.f32 %v950
    %vm957 = vmor %vm955, %vm956
    %v958 = vsel %vm957, %v950, %v954
    %v959 = vand.u32 2147483647, %v736
    %vm960 = vcmp.eq.f32.partialorder %v959, 8.507059e+37
    %v961 = vand.u32 %v736, 2147483648
    %v962 = vor.u32 1.1754944e-38, %v961
    %v963 = vsel %vm960, %v962, %v958
    %v964 = vmul.f32 %v689, %v963
    %v965 = vrcp.pop %v739
    %v966 = vmul.f32 %v739, %v965
    %v967 = vsub.f32 1.0, %v966
    %v968 = vmul.f32 %v965, %v967
    %v969 = vadd.f32 %v965, %v968
    %vm970 = vweird.f32 %v739
    %vm971 = vweird.f32 %v965
    %vm972 = vmor %vm970, %vm971
    %v973 = vsel %vm972, %v965, %v969
    %v974 = vand.u32 2147483647, %v739
    %vm975 = vcmp.eq.f32.partialorder %v974, 8.507059e+37
    %v976 = vand.u32 %v739, 2147483648
    %v977 = vor.u32 1.1754944e-38, %v976
    %v978 = vsel %vm975, %v977, %v973
    %v979 = vmul.f32 %v691, %v978
    %v981 = vsel %vm95, %v754, 0
    %983 = vmatpush.msra.mxu0 0.0
    %984 = vmatpush.msra.mxu0 0.0
    %985 = vmatpush.msra.mxu0 0.0
    %986 = vmatpush.msra.mxu0 0.0
    %987 = vmatpush.msra.mxu0 0.0
    %988 = vmatpush.msra.mxu0 0.0
    %989 = vmatpush.msra.mxu0 0.0
    %990 = vmatpush.msra.mxu0 0.0
    %991 = vmatpush.msra.mxu0 0.0
    %992 = vmatpush.msra.mxu0 0.0
    %993 = vmatpush.msra.mxu0 0.0
    %994 = vmatpush.msra.mxu0 0.0
    %995 = vmatpush.msra.mxu0 0.0
    %996 = vmatpush.msra.mxu0 0.0
    %997 = vmatpush.msra.mxu0 0.0
    %998 = vmatpush.msra.mxu0 %v87
    %999 = vmatmul.f32.gmra.mxu0 %v981
    %v1000 = vpop.f32.mrf.mxu0
    %v1001 = vadd.f32 0.0, %v1000
    %1002 = vdwg.mxu0
    %1003 = vst.msk [vmem:[#allocation3] sm:$0xff] %vm95, %v1001
    %1005 = vrot.lane.b32.xlu0 %v87, 120
    %v1006 = vpop.permute.xlu0 %1005
    %v1009 = vsel %vm95, %v769, 0
    %1011 = vmatpush.msra.mxu0 0.0
    %1012 = vmatpush.msra.mxu0 0.0
    %1013 = vmatpush.msra.mxu0 0.0
    %1014 = vmatpush.msra.mxu0 0.0
    %1015 = vmatpush.msra.mxu0 0.0
    %1016 = vmatpush.msra.mxu0 0.0
    %1017 = vmatpush.msra.mxu0 0.0
    %1018 = vmatpush.msra.mxu0 0.0
    %1019 = vmatpush.msra.mxu0 0.0
    %1020 = vmatpush.msra.mxu0 0.0
    %1021 = vmatpush.msra.mxu0 0.0
    %1022 = vmatpush.msra.mxu0 0.0
    %1023 = vmatpush.msra.mxu0 0.0
    %1024 = vmatpush.msra.mxu0 0.0
    %1025 = vmatpush.msra.mxu0 0.0
    %1026 = vmatpush.msra.mxu0 %v1006
    %1027 = vmatmul.f32.gmra.mxu0 %v1009
    %v1028 = vpop.f32.mrf.mxu0
    %v1029 = vadd.f32 0.0, %v1028
    %1030 = vdwg.mxu0
    %1032 = vrot.lane.b32.xlu0 %v1029, 8
    %v1033 = vpop.permute.xlu0 %1032
    %vm1035 = vcmask 130112
    %1036 = vst.msk [vmem:[#allocation3] sm:$0xff] %vm1035, %v1033
    %1037 = vrot.lane.b32.xlu0 %v87, 112
    %v1038 = vpop.permute.xlu0 %1037
    %v1041 = vsel %vm95, %v784, 0
    %1043 = vmatpush.msra.mxu0 0.0
    %1044 = vmatpush.msra.mxu0 0.0
    %1045 = vmatpush.msra.mxu0 0.0
    %1046 = vmatpush.msra.mxu0 0.0
    %1047 = vmatpush.msra.mxu0 0.0
    %1048 = vmatpush.msra.mxu0 0.0
    %1049 = vmatpush.msra.mxu0 0.0
    %1050 = vmatpush.msra.mxu0 0.0
    %1051 = vmatpush.msra.mxu0 0.0
    %1052 = vmatpush.msra.mxu0 0.0
    %1053 = vmatpush.msra.mxu0 0.0
    %1054 = vmatpush.msra.mxu0 0.0
    %1055 = vmatpush.msra.mxu0 0.0
    %1056 = vmatpush.msra.mxu0 0.0
    %1057 = vmatpush.msra.mxu0 0.0
    %1058 = vmatpush.msra.mxu0 %v1038
    %1059 = vmatmul.f32.gmra.mxu0 %v1041
    %v1060 = vpop.f32.mrf.mxu0
    %v1061 = vadd.f32 0.0, %v1060
    %1062 = vdwg.mxu0
    %1064 = vrot.lane.b32.xlu0 %v1061, 16
    %v1065 = vpop.permute.xlu0 %1064
    %vm1067 = vcmask 195712
    %1068 = vst.msk [vmem:[#allocation3] sm:$0xff] %vm1067, %v1065
    %1069 = vrot.lane.b32.xlu0 %v87, 104
    %v1070 = vpop.permute.xlu0 %1069
    %v1073 = vsel %vm95, %v799, 0
    %1075 = vmatpush.msra.mxu0 0.0
    %1076 = vmatpush.msra.mxu0 0.0
    %1077 = vmatpush.msra.mxu0 0.0
    %1078 = vmatpush.msra.mxu0 0.0
    %1079 = vmatpush.msra.mxu0 0.0
    %1080 = vmatpush.msra.mxu0 0.0
    %1081 = vmatpush.msra.mxu0 0.0
    %1082 = vmatpush.msra.mxu0 0.0
    %1083 = vmatpush.msra.mxu0 0.0
    %1084 = vmatpush.msra.mxu0 0.0
    %1085 = vmatpush.msra.mxu0 0.0
    %1086 = vmatpush.msra.mxu0 0.0
    %1087 = vmatpush.msra.mxu0 0.0
    %1088 = vmatpush.msra.mxu0 0.0
    %1089 = vmatpush.msra.mxu0 0.0
    %1090 = vmatpush.msra.mxu0 %v1070
    %1091 = vmatmul.f32.gmra.mxu0 %v1073
    %v1092 = vpop.f32.mrf.mxu0
    %v1093 = vadd.f32 0.0, %v1092
    %1094 = vdwg.mxu0
    %1096 = vrot.lane.b32.xlu0 %v1093, 24
    %v1097 = vpop.permute.xlu0 %1096
    %vm1099 = vcmask 261312
    %1100 = vst.msk [vmem:[#allocation3] sm:$0xff] %vm1099, %v1097
    %1101 = vrot.lane.b32.xlu0 %v87, 96
    %v1102 = vpop.permute.xlu0 %1101
    %v1105 = vsel %vm95, %v814, 0
    %1107 = vmatpush.msra.mxu0 0.0
    %1108 = vmatpush.msra.mxu0 0.0
    %1109 = vmatpush.msra.mxu0 0.0
    %1110 = vmatpush.msra.mxu0 0.0
    %1111 = vmatpush.msra.mxu0 0.0
    %1112 = vmatpush.msra.mxu0 0.0
    %1113 = vmatpush.msra.mxu0 0.0
    %1114 = vmatpush.msra.mxu0 0.0
    %1115 = vmatpush.msra.mxu0 0.0
    %1116 = vmatpush.msra.mxu0 0.0
    %1117 = vmatpush.msra.mxu0 0.0
    %1118 = vmatpush.msra.mxu0 0.0
    %1119 = vmatpush.msra.mxu0 0.0
    %1120 = vmatpush.msra.mxu0 0.0
    %1121 = vmatpush.msra.mxu0 0.0
    %1122 = vmatpush.msra.mxu0 %v1102
    %1123 = vmatmul.f32.gmra.mxu0 %v1105
    %v1124 = vpop.f32.mrf.mxu0
    %v1125 = vadd.f32 0.0, %v1124
    %1126 = vdwg.mxu0
    %1128 = vrot.lane.b32.xlu0 %v1125, 32
    %v1129 = vpop.permute.xlu0 %1128
    %vm1131 = vcmask 326912
    %1132 = vst.msk [vmem:[#allocation3] sm:$0xff] %vm1131, %v1129
    %1133 = vrot.lane.b32.xlu0 %v87, 88
    %v1134 = vpop.permute.xlu0 %1133
    %v1137 = vsel %vm95, %v829, 0
    %1139 = vmatpush.msra.mxu0 0.0
    %1140 = vmatpush.msra.mxu0 0.0
    %1141 = vmatpush.msra.mxu0 0.0
    %1142 = vmatpush.msra.mxu0 0.0
    %1143 = vmatpush.msra.mxu0 0.0
    %1144 = vmatpush.msra.mxu0 0.0
    %1145 = vmatpush.msra.mxu0 0.0
    %1146 = vmatpush.msra.mxu0 0.0
    %1147 = vmatpush.msra.mxu0 0.0
    %1148 = vmatpush.msra.mxu0 0.0
    %1149 = vmatpush.msra.mxu0 0.0
    %1150 = vmatpush.msra.mxu0 0.0
    %1151 = vmatpush.msra.mxu0 0.0
    %1152 = vmatpush.msra.mxu0 0.0
    %1153 = vmatpush.msra.mxu0 0.0
    %1154 = vmatpush.msra.mxu0 %v1134
    %1155 = vmatmul.f32.gmra.mxu0 %v1137
    %v1156 = vpop.f32.mrf.mxu0
    %v1157 = vadd.f32 0.0, %v1156
    %1158 = vdwg.mxu0
    %1160 = vrot.lane.b32.xlu0 %v1157, 40
    %v1161 = vpop.permute.xlu0 %1160
    %vm1163 = vcmask 392512
    %1164 = vst.msk [vmem:[#allocation3] sm:$0xff] %vm1163, %v1161
    %1165 = vrot.lane.b32.xlu0 %v87, 80
    %v1166 = vpop.permute.xlu0 %1165
    %v1169 = vsel %vm95, %v844, 0
    %1171 = vmatpush.msra.mxu0 0.0
    %1172 = vmatpush.msra.mxu0 0.0
    %1173 = vmatpush.msra.mxu0 0.0
    %1174 = vmatpush.msra.mxu0 0.0
    %1175 = vmatpush.msra.mxu0 0.0
    %1176 = vmatpush.msra.mxu0 0.0
    %1177 = vmatpush.msra.mxu0 0.0
    %1178 = vmatpush.msra.mxu0 0.0
    %1179 = vmatpush.msra.mxu0 0.0
    %1180 = vmatpush.msra.mxu0 0.0
    %1181 = vmatpush.msra.mxu0 0.0
    %1182 = vmatpush.msra.mxu0 0.0
    %1183 = vmatpush.msra.mxu0 0.0
    %1184 = vmatpush.msra.mxu0 0.0
    %1185 = vmatpush.msra.mxu0 0.0
    %1186 = vmatpush.msra.mxu0 %v1166
    %1187 = vmatmul.f32.gmra.mxu0 %v1169
    %v1188 = vpop.f32.mrf.mxu0
    %v1189 = vadd.f32 0.0, %v1188
    %1190 = vdwg.mxu0
    %1192 = vrot.lane.b32.xlu0 %v1189, 48
    %v1193 = vpop.permute.xlu0 %1192
    %vm1195 = vcmask 458112
    %1196 = vst.msk [vmem:[#allocation3] sm:$0xff] %vm1195, %v1193
    %1197 = vrot.lane.b32.xlu0 %v87, 72
    %v1198 = vpop.permute.xlu0 %1197
    %v1201 = vsel %vm95, %v859, 0
    %1203 = vmatpush.msra.mxu0 0.0
    %1204 = vmatpush.msra.mxu0 0.0
    %1205 = vmatpush.msra.mxu0 0.0
    %1206 = vmatpush.msra.mxu0 0.0
    %1207 = vmatpush.msra.mxu0 0.0
    %1208 = vmatpush.msra.mxu0 0.0
    %1209 = vmatpush.msra.mxu0 0.0
    %1210 = vmatpush.msra.mxu0 0.0
    %1211 = vmatpush.msra.mxu0 0.0
    %1212 = vmatpush.msra.mxu0 0.0
    %1213 = vmatpush.msra.mxu0 0.0
    %1214 = vmatpush.msra.mxu0 0.0
    %1215 = vmatpush.msra.mxu0 0.0
    %1216 = vmatpush.msra.mxu0 0.0
    %1217 = vmatpush.msra.mxu0 0.0
    %1218 = vmatpush.msra.mxu0 %v1198
    %1219 = vmatmul.f32.gmra.mxu0 %v1201
    %v1220 = vpop.f32.mrf.mxu0
    %v1221 = vadd.f32 0.0, %v1220
    %1222 = vdwg.mxu0
    %1224 = vrot.lane.b32.xlu0 %v1221, 56
    %v1225 = vpop.permute.xlu0 %1224
    %vm1227 = vcmask 523712
    %1228 = vst.msk [vmem:[#allocation3] sm:$0xff] %vm1227, %v1225
    %v1230 = vsel %vm95, %v874, 0
    %1232 = vmatpush.msra.mxu0 0.0
    %1233 = vmatpush.msra.mxu0 0.0
    %1234 = vmatpush.msra.mxu0 0.0
    %1235 = vmatpush.msra.mxu0 0.0
    %1236 = vmatpush.msra.mxu0 0.0
    %1237 = vmatpush.msra.mxu0 0.0
    %1238 = vmatpush.msra.mxu0 0.0
    %1239 = vmatpush.msra.mxu0 0.0
    %1240 = vmatpush.msra.mxu0 0.0
    %1241 = vmatpush.msra.mxu0 0.0
    %1242 = vmatpush.msra.mxu0 0.0
    %1243 = vmatpush.msra.mxu0 0.0
    %1244 = vmatpush.msra.mxu0 0.0
    %1245 = vmatpush.msra.mxu0 0.0
    %1246 = vmatpush.msra.mxu0 0.0
    %1247 = vmatpush.msra.mxu0 %v90
    %1248 = vmatmul.f32.gmra.mxu0 %v1230
    %v1249 = vpop.f32.mrf.mxu0
    %v1250 = vadd.f32 0.0, %v1249
    %1251 = vdwg.mxu0
    %1252 = vst.msk [vmem:[#allocation3 + $0x8] sm:$0xff] %vm95, %v1250
    %1254 = vrot.lane.b32.xlu0 %v90, 120
    %v1255 = vpop.permute.xlu0 %1254
    %v1258 = vsel %vm95, %v889, 0
    %1260 = vmatpush.msra.mxu0 0.0
    %1261 = vmatpush.msra.mxu0 0.0
    %1262 = vmatpush.msra.mxu0 0.0
    %1263 = vmatpush.msra.mxu0 0.0
    %1264 = vmatpush.msra.mxu0 0.0
    %1265 = vmatpush.msra.mxu0 0.0
    %1266 = vmatpush.msra.mxu0 0.0
    %1267 = vmatpush.msra.mxu0 0.0
    %1268 = vmatpush.msra.mxu0 0.0
    %1269 = vmatpush.msra.mxu0 0.0
    %1270 = vmatpush.msra.mxu0 0.0
    %1271 = vmatpush.msra.mxu0 0.0
    %1272 = vmatpush.msra.mxu0 0.0
    %1273 = vmatpush.msra.mxu0 0.0
    %1274 = vmatpush.msra.mxu0 0.0
    %1275 = vmatpush.msra.mxu0 %v1255
    %1276 = vmatmul.f32.gmra.mxu0 %v1258
    %v1277 = vpop.f32.mrf.mxu0
    %v1278 = vadd.f32 0.0, %v1277
    %1279 = vdwg.mxu0
    %1281 = vrot.lane.b32.xlu0 %v1278, 8
    %v1282 = vpop.permute.xlu0 %1281
    %1284 = vst.msk [vmem:[#allocation3 + $0x8] sm:$0xff] %vm1035, %v1282
    %1285 = vrot.lane.b32.xlu0 %v90, 112
    %v1286 = vpop.permute.xlu0 %1285
    %v1289 = vsel %vm95, %v904, 0
    %1291 = vmatpush.msra.mxu0 0.0
    %1292 = vmatpush.msra.mxu0 0.0
    %1293 = vmatpush.msra.mxu0 0.0
    %1294 = vmatpush.msra.mxu0 0.0
    %1295 = vmatpush.msra.mxu0 0.0
    %1296 = vmatpush.msra.mxu0 0.0
    %1297 = vmatpush.msra.mxu0 0.0
    %1298 = vmatpush.msra.mxu0 0.0
    %1299 = vmatpush.msra.mxu0 0.0
    %1300 = vmatpush.msra.mxu0 0.0
    %1301 = vmatpush.msra.mxu0 0.0
    %1302 = vmatpush.msra.mxu0 0.0
    %1303 = vmatpush.msra.mxu0 0.0
    %1304 = vmatpush.msra.mxu0 0.0
    %1305 = vmatpush.msra.mxu0 0.0
    %1306 = vmatpush.msra.mxu0 %v1286
    %1307 = vmatmul.f32.gmra.mxu0 %v1289
    %v1308 = vpop.f32.mrf.mxu0
    %v1309 = vadd.f32 0.0, %v1308
    %1310 = vdwg.mxu0
    %1312 = vrot.lane.b32.xlu0 %v1309, 16
    %v1313 = vpop.permute.xlu0 %1312
    %1315 = vst.msk [vmem:[#allocation3 + $0x8] sm:$0xff] %vm1067, %v1313
    %1316 = vrot.lane.b32.xlu0 %v90, 104
    %v1317 = vpop.permute.xlu0 %1316
    %v1320 = vsel %vm95, %v919, 0
    %1322 = vmatpush.msra.mxu0 0.0
    %1323 = vmatpush.msra.mxu0 0.0
    %1324 = vmatpush.msra.mxu0 0.0
    %1325 = vmatpush.msra.mxu0 0.0
    %1326 = vmatpush.msra.mxu0 0.0
    %1327 = vmatpush.msra.mxu0 0.0
    %1328 = vmatpush.msra.mxu0 0.0
    %1329 = vmatpush.msra.mxu0 0.0
    %1330 = vmatpush.msra.mxu0 0.0
    %1331 = vmatpush.msra.mxu0 0.0
    %1332 = vmatpush.msra.mxu0 0.0
    %1333 = vmatpush.msra.mxu0 0.0
    %1334 = vmatpush.msra.mxu0 0.0
    %1335 = vmatpush.msra.mxu0 0.0
    %1336 = vmatpush.msra.mxu0 0.0
    %1337 = vmatpush.msra.mxu0 %v1317
    %1338 = vmatmul.f32.gmra.mxu0 %v1320
    %v1339 = vpop.f32.mrf.mxu0
    %v1340 = vadd.f32 0.0, %v1339
    %1341 = vdwg.mxu0
    %1343 = vrot.lane.b32.xlu0 %v1340, 24
    %v1344 = vpop.permute.xlu0 %1343
    %1346 = vst.msk [vmem:[#allocation3 + $0x8] sm:$0xff] %vm1099, %v1344
    %1347 = vrot.lane.b32.xlu0 %v90, 96
    %v1348 = vpop.permute.xlu0 %1347
    %v1351 = vsel %vm95, %v934, 0
    %1353 = vmatpush.msra.mxu0 0.0
    %1354 = vmatpush.msra.mxu0 0.0
    %1355 = vmatpush.msra.mxu0 0.0
    %1356 = vmatpush.msra.mxu0 0.0
    %1357 = vmatpush.msra.mxu0 0.0
    %1358 = vmatpush.msra.mxu0 0.0
    %1359 = vmatpush.msra.mxu0 0.0
    %1360 = vmatpush.msra.mxu0 0.0
    %1361 = vmatpush.msra.mxu0 0.0
    %1362 = vmatpush.msra.mxu0 0.0
    %1363 = vmatpush.msra.mxu0 0.0
    %1364 = vmatpush.msra.mxu0 0.0
    %1365 = vmatpush.msra.mxu0 0.0
    %1366 = vmatpush.msra.mxu0 0.0
    %1367 = vmatpush.msra.mxu0 0.0
    %1368 = vmatpush.msra.mxu0 %v1348
    %1369 = vmatmul.f32.gmra.mxu0 %v1351
    %v1370 = vpop.f32.mrf.mxu0
    %v1371 = vadd.f32 0.0, %v1370
    %1372 = vdwg.mxu0
    %1374 = vrot.lane.b32.xlu0 %v1371, 32
    %v1375 = vpop.permute.xlu0 %1374
    %1377 = vst.msk [vmem:[#allocation3 + $0x8] sm:$0xff] %vm1131, %v1375
    %1378 = vrot.lane.b32.xlu0 %v90, 88
    %v1379 = vpop.permute.xlu0 %1378
    %v1382 = vsel %vm95, %v949, 0
    %1384 = vmatpush.msra.mxu0 0.0
    %1385 = vmatpush.msra.mxu0 0.0
    %1386 = vmatpush.msra.mxu0 0.0
    %1387 = vmatpush.msra.mxu0 0.0
    %1388 = vmatpush.msra.mxu0 0.0
    %1389 = vmatpush.msra.mxu0 0.0
    %1390 = vmatpush.msra.mxu0 0.0
    %1391 = vmatpush.msra.mxu0 0.0
    %1392 = vmatpush.msra.mxu0 0.0
    %1393 = vmatpush.msra.mxu0 0.0
    %1394 = vmatpush.msra.mxu0 0.0
    %1395 = vmatpush.msra.mxu0 0.0
    %1396 = vmatpush.msra.mxu0 0.0
    %1397 = vmatpush.msra.mxu0 0.0
    %1398 = vmatpush.msra.mxu0 0.0
    %1399 = vmatpush.msra.mxu0 %v1379
    %1400 = vmatmul.f32.gmra.mxu0 %v1382
    %v1401 = vpop.f32.mrf.mxu0
    %v1402 = vadd.f32 0.0, %v1401
    %1403 = vdwg.mxu0
    %1405 = vrot.lane.b32.xlu0 %v1402, 40
    %v1406 = vpop.permute.xlu0 %1405
    %1408 = vst.msk [vmem:[#allocation3 + $0x8] sm:$0xff] %vm1163, %v1406
    %1409 = vrot.lane.b32.xlu0 %v90, 80
    %v1410 = vpop.permute.xlu0 %1409
    %v1413 = vsel %vm95, %v964, 0
    %1415 = vmatpush.msra.mxu0 0.0
    %1416 = vmatpush.msra.mxu0 0.0
    %1417 = vmatpush.msra.mxu0 0.0
    %1418 = vmatpush.msra.mxu0 0.0
    %1419 = vmatpush.msra.mxu0 0.0
    %1420 = vmatpush.msra.mxu0 0.0
    %1421 = vmatpush.msra.mxu0 0.0
    %1422 = vmatpush.msra.mxu0 0.0
    %1423 = vmatpush.msra.mxu0 0.0
    %1424 = vmatpush.msra.mxu0 0.0
    %1425 = vmatpush.msra.mxu0 0.0
    %1426 = vmatpush.msra.mxu0 0.0
    %1427 = vmatpush.msra.mxu0 0.0
    %1428 = vmatpush.msra.mxu0 0.0
    %1429 = vmatpush.msra.mxu0 0.0
    %1430 = vmatpush.msra.mxu0 %v1410
    %1431 = vmatmul.f32.gmra.mxu0 %v1413
    %v1432 = vpop.f32.mrf.mxu0
    %v1433 = vadd.f32 0.0, %v1432
    %1434 = vdwg.mxu0
    %1436 = vrot.lane.b32.xlu0 %v1433, 48
    %v1437 = vpop.permute.xlu0 %1436
    %1439 = vst.msk [vmem:[#allocation3 + $0x8] sm:$0xff] %vm1195, %v1437
    %1440 = vrot.lane.b32.xlu0 %v90, 72
    %v1441 = vpop.permute.xlu0 %1440
    %v1444 = vsel %vm95, %v979, 0
    %1446 = vmatpush.msra.mxu0 0.0
    %1447 = vmatpush.msra.mxu0 0.0
    %1448 = vmatpush.msra.mxu0 0.0
    %1449 = vmatpush.msra.mxu0 0.0
    %1450 = vmatpush.msra.mxu0 0.0
    %1451 = vmatpush.msra.mxu0 0.0
    %1452 = vmatpush.msra.mxu0 0.0
    %1453 = vmatpush.msra.mxu0 0.0
    %1454 = vmatpush.msra.mxu0 0.0
    %1455 = vmatpush.msra.mxu0 0.0
    %1456 = vmatpush.msra.mxu0 0.0
    %1457 = vmatpush.msra.mxu0 0.0
    %1458 = vmatpush.msra.mxu0 0.0
    %1459 = vmatpush.msra.mxu0 0.0
    %1460 = vmatpush.msra.mxu0 0.0
    %1461 = vmatpush.msra.mxu0 %v1441
    %1462 = vmatmul.f32.gmra.mxu0 %v1444
    %v1463 = vpop.f32.mrf.mxu0
    %v1464 = vadd.f32 0.0, %v1463
    %1465 = vdwg.mxu0
    %1467 = vrot.lane.b32.xlu0 %v1464, 56
    %v1468 = vpop.permute.xlu0 %1467
    %1470 = vst.msk [vmem:[#allocation3 + $0x8] sm:$0xff] %vm1227, %v1468
    %v1471 = vld [vmem:[#allocation3] sm:$0xff]
    %v1472 = vld [vmem:[#allocation3 + $0x8] sm:$0xff]
    %v1473 = vld [vmem:[%s2] sm:$0xff]
    %v1474 = vld [vmem:[%s2 + $0x8] sm:$0xff]
    %v1475 = vld [vmem:[%s2 + $0x10] sm:$0xff]
    %v1476 = vld [vmem:[%s2 + $0x18] sm:$0xff]
    %v1477 = vld [vmem:[%s2 + $0x20] sm:$0xff]
    %v1478 = vld [vmem:[%s2 + $0x28] sm:$0xff]
    %v1479 = vld [vmem:[%s2 + $0x30] sm:$0xff]
    %v1480 = vld [vmem:[%s2 + $0x38] sm:$0xff]
    %v1481 = vld [vmem:[%s3] sm:$0x1]
    %v1483 = vperm.slane %v1481, 0
    %v1486 = vsel %vm39, %v1471, 0
    %v1489 = vsel %vm39, %v1472, 0
    %1491 = vmatpush.msra.mxu0 0.0
    %1492 = vmatpush.msra.mxu0 0.0
    %1493 = vmatpush.msra.mxu0 0.0
    %1494 = vmatpush.msra.mxu0 0.0
    %1495 = vmatpush.msra.mxu0 0.0
    %1496 = vmatpush.msra.mxu0 0.0
    %1497 = vmatpush.msra.mxu0 0.0
    %1498 = vmatpush.msra.mxu0 0.0
    %1499 = vmatpush.msra.mxu0 %v1480
    %1500 = vmatpush.msra.mxu0 %v1479
    %1501 = vmatpush.msra.mxu0 %v1478
    %1502 = vmatpush.msra.mxu0 %v1477
    %1503 = vmatpush.msra.mxu0 %v1476
    %1504 = vmatpush.msra.mxu0 %v1475
    %1505 = vmatpush.msra.mxu0 %v1474
    %1506 = vmatpush.msra.mxu0 %v1473
    %1507 = vmatmul.f32.gmra.mxu0 %v1486
    %v1508 = vpop.f32.mrf.mxu0
    %v1509 = vadd.f32 %v1483, %v1508
    %1510 = vmatmul.f32.gmra.mxu0 %v1489
    %v1511 = vpop.f32.mrf.mxu0
    %v1512 = vadd.f32 %v1483, %v1511
    %1513 = vdwg.mxu0
    %1514 = vst.msk [vmem:[#allocation4] sm:$0xff] %vm39, %v1509
    %1515 = vst.msk [vmem:[#allocation4 + $0x8] sm:$0xff] %vm39, %v1512
    // Predicated region
    $region22: #{attention_forward.1} parent=1 // pred_check
      _
    $region23: #{attention_forward.1} parent=1 // pred_check_branch
      %1517 = sbr.rel (0) target = $region25
    $region24: #{attention_forward.1} parent=1 // pred_region
      %1519 = vsyncadd [#allocation5], 0
      %s1520 = sshll.u32 [#allocation4], 4
      %s1521 = int_to_ptr.vmem [resolvable:$true] %s1520
      %s1522 = sshll.u32 %s5, 4
      %s1523 = int_to_ptr.hbm [resolvable:$true] %s1522
      %1528 = dma.vmem_to_hbm [thread:$0]  %s1521, 256, %s1523, [#allocation5], 128, 128, 8
    $region25: #{attention_forward.1} parent=1 // pred_fallthru
      _
    // Predicated region
    $region26: #{attention_forward.1} parent=1 // pred_check
      _
    $region27: #{attention_forward.1} parent=1 // pred_check_branch
      %1530 = sbr.rel (0) target = $region29
    $region28: #{attention_forward.1} parent=1 // pred_region
      %1532 = dma.done [#allocation5], 256
    $region29: #{attention_forward.1} parent=1 // pred_fallthru
      _
    %1533 = vsyncpa [#allocation5], 1

</llo_original>
